<compile_context>
chip_gen: v6e
topology: v6e:2x2x1
jax: 0.10.0
libtpu: 0.0.40
codegen_flags: <defaults>
</compile_context>

<pallas_src>
from collections import namedtuple

import jax
import jax.numpy as jnp
from jax.experimental import pallas as pl
from jax.experimental.pallas import tpu as pltpu


MXU_DTYPE = jnp.bfloat16   # matmul-input dtype; accumulation stays f32


# ---------------------------------------------------------------------------
# In-kernel helpers
# ---------------------------------------------------------------------------
def _layernorm(x, g, b, eps=1e-5):
    mu = jnp.mean(x, axis=-1, keepdims=True)
    var = jnp.mean((x - mu) ** 2, axis=-1, keepdims=True)
    return (x - mu) * jax.lax.rsqrt(var + eps) * g + b


def _softmax(s):
    # s is f32 (mask already added in f32).  exp on EUP, reciprocal on EUP.
    m = jnp.max(s, axis=-1, keepdims=True)
    e = jnp.exp(s - m)
    return e * pl.reciprocal(jnp.sum(e, axis=-1, keepdims=True), approx=True)


def _mdot(a, b):
    # MXU matmul with bf16 inputs, f32 accumulation.
    return jnp.dot(a.astype(MXU_DTYPE), b.astype(MXU_DTYPE),
                   preferred_element_type=jnp.float32)


def _mdot_nt(a, b):
    # a @ b.T without materializing the transpose (contract last dims).
    return jax.lax.dot_general(
        a.astype(MXU_DTYPE), b.astype(MXU_DTYPE),
        dimension_numbers=(((1,), (1,)), ((), ())),
        preferred_element_type=jnp.float32)


# ---------------------------------------------------------------------------
# Fused Pallas kernel: ALL decoder layers, grid=(num_layers,)
# ---------------------------------------------------------------------------
def fused_decoder_kernel(
    q_in_ref,        # [Q, D]   initial query embeddings
    mem_ref,         # [S, D]   memory tokens (img features ++ add_keys)
    amask_ref,       # [Q, Q]   additive self-attn mask (0 / -1e9), f32
    mmask_ref,       # [1, S]   additive memory padding mask (0 / -1e9), f32
    wqkv_s_ref,      # [D, 3D]  fused self-attn Wq|Wk|Wv (per layer)
    bqkv_s_ref,      # [1, 3D]
    wo_s_ref,        # [D, D]   self-attn out proj
    bo_s_ref,        # [1, D]
    wq_c_ref,        # [D, D]   cross-attn Wq
    bq_c_ref,        # [1, D]
    wkv_c_ref,       # [D, 2D]  fused cross-attn Wk|Wv
    bkv_c_ref,       # [1, 2D]
    wo_c_ref,        # [D, D]   cross-attn out proj
    bo_c_ref,        # [1, D]
    ln_ref,          # [6, D]   g1,b1,g2,b2,g3,b3
    w1_ref,          # [D, F]
    b1_ref,          # [1, F]
    w2_ref,          # [F, D]
    b2_ref,          # [1, D]
    hs_ref,          # [Q, D]   output: this layer's query embeddings
    x_scr,           # [Q, D]   f32 scratch: query state, resident across layers
):
    l = pl.program_id(0)

    @pl.when(l == 0)
    def _():
        x_scr[...] = q_in_ref[...]

    x = x_scr[...]                      # f32 [Q, D]
    mem = mem_ref[...]                  # f32 [S, D]
    d = x.shape[-1]
    scale = 1.0 / jnp.sqrt(jnp.float32(d))

    # ---- self-attention over queries (single head, fused QKV projection) ----
    qkv = _mdot(x, wqkv_s_ref[...]) + bqkv_s_ref[...]          # [Q, 3D]
    q = qkv[:, :d]
    k = qkv[:, d:2 * d]
    v = qkv[:, 2 * d:]
    s = _mdot_nt(q, k) * scale + amask_ref[...]                # f32 [Q, Q]
    p = _softmax(s)
    sa = _mdot(p, v)
    sa = _mdot(sa, wo_s_ref[...]) + bo_s_ref[...]
    x = _layernorm(x + sa, ln_ref[0:1, :], ln_ref[1:2, :])

    # ---- cross-attention: queries attend to (img tokens ++ add_keys) ----
    qc = _mdot(x, wq_c_ref[...]) + bq_c_ref[...]               # [Q, D]
    kv_c = _mdot(mem, wkv_c_ref[...]) + bkv_c_ref[...]         # [S, 2D]
    kc = kv_c[:, :d]
    vc = kv_c[:, d:]
    sc = _mdot_nt(qc, kc) * scale + mmask_ref[...]             # f32 [Q, S]
    pc = _softmax(sc)
    ca = _mdot(pc, vc)
    ca = _mdot(ca, wo_c_ref[...]) + bo_c_ref[...]
    x = _layernorm(x + ca, ln_ref[2:3, :], ln_ref[3:4, :])

    # ---- feed-forward network ----
    h = _mdot(x, w1_ref[...]) + b1_ref[...]
    h = jnp.maximum(h, 0.0)
    f = _mdot(h, w2_ref[...]) + b2_ref[...]
    x = _layernorm(x + f, ln_ref[4:5, :], ln_ref[5:6, :])

    x_scr[...] = x                      # carry to next layer
    hs_ref[...] = x                     # per-layer output (lane dim = D)


def run_fused_decoder(x0, memory, attn_mask_add, mem_mask_add, p):
    Q, D = x0.shape
    S = memory.shape[0]
    L = p["w_qkv_self"].shape[0]
    F = p["w1"].shape[-1]

    def wspec(shape):
        # Per-layer weight: leading L axis squeezed, rest full-block.
        nd = len(shape)
        return pl.BlockSpec((None,) + shape, lambda l, _n=nd: (l,) + (0,) * _n)

    def fixed(shape):
        # Layer-invariant operand: same block every grid step.
        nd = len(shape)
        return pl.BlockSpec(shape, lambda l, _n=nd: (0,) * _n)

    in_specs = [
        fixed((Q, D)),                 # q_in
        fixed((S, D)),                 # memory
        fixed((Q, Q)),                 # self-attn mask
        fixed((1, S)),                 # memory mask
        wspec((D, 3 * D)), wspec((1, 3 * D)),    # fused self QKV
        wspec((D, D)),     wspec((1, D)),        # self out proj
        wspec((D, D)),     wspec((1, D)),        # cross Q proj
        wspec((D, 2 * D)), wspec((1, 2 * D)),    # fused cross KV
        wspec((D, D)),     wspec((1, D)),        # cross out proj
        wspec((6, D)),                           # layernorm params
        wspec((D, F)),     wspec((1, F)),        # FFN w1/b1
        wspec((F, D)),     wspec((1, D)),        # FFN w2/b2
    ]

    grid_spec = pltpu.PrefetchScalarGridSpec(
        num_scalar_prefetch=0,
        grid=(L,),
        in_specs=in_specs,
        out_specs=pl.BlockSpec((None, Q, D), lambda l: (l, 0, 0)),
        scratch_shapes=[pltpu.VMEM((Q, D), jnp.float32)],
    )

    inputs = (
        x0, memory, attn_mask_add, mem_mask_add,
        p["w_qkv_self"], p["b_qkv_self"], p["w_o_self"], p["b_o_self"],
        p["w_q_cross"], p["b_q_cross"], p["w_kv_cross"], p["b_kv_cross"],
        p["w_o_cross"], p["b_o_cross"], p["ln"],
        p["w1"], p["b1"], p["w2"], p["b2"],
    )

    # Advisory cost estimate so XLA schedules the surrounding ops sensibly.
    flops = 2 * L * (
        Q * D * 3 * D + 2 * Q * Q * D + Q * D * D          # self-attn
        + Q * D * D + S * D * 2 * D + 2 * Q * S * D + Q * D * D  # cross-attn
        + 2 * Q * D * F                                     # FFN
    )
    transcendentals = L * (Q * Q + Q * S + 2 * Q)           # exp + reciprocal
    bytes_accessed = sum(int(a.size) * a.dtype.itemsize for a in inputs) \
        + L * Q * D * 4

    call = pl.pallas_call(
        fused_decoder_kernel,
        out_shape=jax.ShapeDtypeStruct((L, Q, D), jnp.float32),
        grid_spec=grid_spec,
        compiler_params=pltpu.CompilerParams(
            dimension_semantics=("arbitrary",),   # layer axis is sequential
        ),
        cost_estimate=pl.CostEstimate(
            flops=int(flops),
            transcendentals=int(transcendentals),
            bytes_accessed=int(bytes_accessed),
        ),
    )
    return call(*inputs)                # hs: [L, Q, D]


# ---------------------------------------------------------------------------
# Plain-JAX glue (layout plumbing, masks, delta head, iterative refinement)
# ---------------------------------------------------------------------------
def inverse_sigmoid(x, eps=1e-5):
    x = jnp.clip(x, eps, 1.0 - eps)
    return jnp.log(x) - jnp.log1p(-x)


def general_decoder_forward(params, img_features, add_keys, track_instances_pos,
                            attn_mask, img_masks):
    # GeneralDecoder.forward: add batch dim to the track-instance queries.
    q_emb = track_instances_pos.q_emb[None]      # [1, Q, D]
    q_ref = track_instances_pos.q_ref[None]      # [1, Q, 2]

    B, C, H, W = img_features.shape
    assert B == 1, "kernel handles the single-batch case produced by [None]"

    # NCHW -> [H*W, C] token layout, then append add_keys ('addkeys' decoder).
    mem_img = jnp.transpose(img_features[0].reshape(C, H * W))   # [HW, C]
    memory = jnp.concatenate([mem_img, add_keys[0]], axis=0)     # [S, C]

    img_mask_flat = img_masks[0].reshape(-1)                     # [HW] bool, True = pad
    add_mask = jnp.zeros((add_keys.shape[1],), dtype=bool)
    mem_mask = jnp.concatenate([img_mask_flat, add_mask], axis=0)
    mem_mask_add = jnp.where(mem_mask, -1e9, 0.0).astype(jnp.float32)[None, :]
    attn_mask_add = jnp.where(attn_mask, -1e9, 0.0).astype(jnp.float32)

    x0 = q_emb[0].astype(jnp.float32)            # [Q, D]
    ref0 = q_ref[0].astype(jnp.float32)          # [Q, 2]

    # One fused pallas_call over all layers.
    hs = run_fused_decoder(x0, memory.astype(jnp.float32),
                           attn_mask_add, mem_mask_add, params)   # [L, Q, D]

    # Reference-point delta head (2-lane output kept out of the kernel's
    # store path) + iterative sigmoid refinement as one scan.
    deltas = jnp.einsum("lqd,ldk->lqk", hs, params["w_ref"]) + params["b_ref"]

    def _refine(ref, delta):
        new = jax.nn.sigmoid(inverse_sigmoid(ref) + delta)
        return new, new

    _, refs = jax.lax.scan(_refine, ref0, deltas)   # [L, Q, 2]

    return hs[:, None], refs[:, None]               # [L,1,Q,D], [L,1,Q,2]


def init_params(key, D=32, F=64, num_layers=2):
    L = num_layers
    ks = jax.random.split(key, 8)

    def rnd(k, shape, dtype):
        return (jax.random.normal(k, shape) * 0.05).astype(dtype)

    ln_one = jnp.concatenate(
        [jnp.ones((1, D)), jnp.zeros((1, D))] * 3, axis=0
    ).astype(jnp.float32)                                    # [6, D]

    return dict(
        # Projection weights stored in bf16 (MXU inputs, halves DMA bytes);
        # biases / layernorm / ref head stay f32.
        w_qkv_self=rnd(ks[0], (L, D, 3 * D), MXU_DTYPE),
        b_qkv_self=jnp.zeros((L, 1, 3 * D), jnp.float32),
        w_o_self=rnd(ks[1], (L, D, D), MXU_DTYPE),
        b_o_self=jnp.zeros((L, 1, D), jnp.float32),
        w_q_cross=rnd(ks[2], (L, D, D), MXU_DTYPE),
        b_q_cross=jnp.zeros((L, 1, D), jnp.float32),
        w_kv_cross=rnd(ks[3], (L, D, 2 * D), MXU_DTYPE),
        b_kv_cross=jnp.zeros((L, 1, 2 * D), jnp.float32),
        w_o_cross=rnd(ks[4], (L, D, D), MXU_DTYPE),
        b_o_cross=jnp.zeros((L, 1, D), jnp.float32),
        ln=jnp.tile(ln_one[None], (L, 1, 1)),
        w1=rnd(ks[5], (L, D, F), MXU_DTYPE),
        b1=jnp.zeros((L, 1, F), jnp.float32),
        w2=rnd(ks[6], (L, F, D), MXU_DTYPE),
        b2=jnp.zeros((L, 1, D), jnp.float32),
        w_ref=rnd(ks[7], (L, D, 2), jnp.float32),
        b_ref=jnp.zeros((L, 1, 2), jnp.float32),
    )


TrackInstancesPos = namedtuple("TrackInstancesPos", ["q_emb", "q_ref"])


if __name__ == "__main__":
    key = jax.random.PRNGKey(0)
    B, C, H, W = 1, 32, 4, 4          # img_features NCHW
    Q, K_ADD = 8, 8                   # num queries, num extra keys
    NUM_LAYERS = 2

    kimg, kadd, kq, kr, kp, km = jax.random.split(key, 6)
    img_features = jax.random.normal(kimg, (B, C, H, W), jnp.float32)
    add_keys = jax.random.normal(kadd, (B, K_ADD, C), jnp.float32)
    track_instances_pos = TrackInstancesPos(
        q_emb=jax.random.normal(kq, (Q, C), jnp.float32),
        q_ref=jax.random.uniform(kr, (Q, 2), jnp.float32, 0.1, 0.9),
    )
    attn_mask = jax.random.bernoulli(km, 0.2, (Q, Q))
    attn_mask = attn_mask.at[jnp.arange(Q), jnp.arange(Q)].set(False)  # keep diag open
    img_masks = jnp.zeros((B, H, W), dtype=bool).at[:, :, W - 1].set(True)  # pad last col

    params = init_params(kp, D=C, F=64, num_layers=NUM_LAYERS)

    fwd = jax.jit(general_decoder_forward)
    hs, refs = fwd(params, img_features, add_keys, track_instances_pos,
                   attn_mask, img_masks)
    jax.block_until_ready((hs, refs))

    assert hs.shape == (NUM_LAYERS, 1, Q, C) and refs.shape == (NUM_LAYERS, 1, Q, 2)
    assert bool(jnp.all(jnp.isfinite(hs))) and bool(jnp.all(jnp.isfinite(refs)))
    print("KERNEL_OK")
</pallas_src>

<mosaic_0001>
module attributes {stable_mosaic.version = 11 : i64} {
  func.func @fused_decoder_kernel(%arg0: i32, %arg1: memref<8x32xf32, #tpu.memory_space<vmem>>, %arg2: memref<24x32xf32, #tpu.memory_space<vmem>>, %arg3: memref<8x8xf32, #tpu.memory_space<vmem>>, %arg4: memref<1x24xf32, #tpu.memory_space<vmem>>, %arg5: memref<1x32x96xbf16, #tpu.memory_space<vmem>>, %arg6: memref<1x1x96xf32, #tpu.memory_space<vmem>>, %arg7: memref<1x32x32xbf16, #tpu.memory_space<vmem>>, %arg8: memref<1x1x32xf32, #tpu.memory_space<vmem>>, %arg9: memref<1x32x32xbf16, #tpu.memory_space<vmem>>, %arg10: memref<1x1x32xf32, #tpu.memory_space<vmem>>, %arg11: memref<1x32x64xbf16, #tpu.memory_space<vmem>>, %arg12: memref<1x1x64xf32, #tpu.memory_space<vmem>>, %arg13: memref<1x32x32xbf16, #tpu.memory_space<vmem>>, %arg14: memref<1x1x32xf32, #tpu.memory_space<vmem>>, %arg15: memref<1x6x32xf32, #tpu.memory_space<vmem>>, %arg16: memref<1x32x64xbf16, #tpu.memory_space<vmem>>, %arg17: memref<1x1x64xf32, #tpu.memory_space<vmem>>, %arg18: memref<1x64x32xbf16, #tpu.memory_space<vmem>>, %arg19: memref<1x1x32xf32, #tpu.memory_space<vmem>>, %arg20: memref<1x8x32xf32, #tpu.memory_space<vmem>>, %arg21: memref<8x32xf32, #tpu.memory_space<vmem>>) attributes {dimension_semantics = [#tpu.dimension_semantics<arbitrary>], iteration_bounds = array<i64: 2>, scalar_prefetch = 0 : i64, scratch_operands = 1 : i64, tpu.core_type = #tpu.core_type<tc>, window_params = [{pipeline_mode = #tpu.pipeline_mode<synchronous>, transform_indices = @transform_0, window_bounds = array<i64: 8, 32>}, {pipeline_mode = #tpu.pipeline_mode<synchronous>, transform_indices = @transform_1, window_bounds = array<i64: 24, 32>}, {pipeline_mode = #tpu.pipeline_mode<synchronous>, transform_indices = @transform_2, window_bounds = array<i64: 8, 8>}, {pipeline_mode = #tpu.pipeline_mode<synchronous>, transform_indices = @transform_3, window_bounds = array<i64: 1, 24>}, {transform_indices = @transform_4, window_bounds = array<i64: 1, 32, 96>}, {transform_indices = @transform_5, window_bounds = array<i64: 1, 1, 96>}, {transform_indices = @transform_6, window_bounds = array<i64: 1, 32, 32>}, {transform_indices = @transform_7, window_bounds = array<i64: 1, 1, 32>}, {transform_indices = @transform_8, window_bounds = array<i64: 1, 32, 32>}, {transform_indices = @transform_9, window_bounds = array<i64: 1, 1, 32>}, {transform_indices = @transform_10, window_bounds = array<i64: 1, 32, 64>}, {transform_indices = @transform_11, window_bounds = array<i64: 1, 1, 64>}, {transform_indices = @transform_12, window_bounds = array<i64: 1, 32, 32>}, {transform_indices = @transform_13, window_bounds = array<i64: 1, 1, 32>}, {transform_indices = @transform_14, window_bounds = array<i64: 1, 6, 32>}, {transform_indices = @transform_15, window_bounds = array<i64: 1, 32, 64>}, {transform_indices = @transform_16, window_bounds = array<i64: 1, 1, 64>}, {transform_indices = @transform_17, window_bounds = array<i64: 1, 64, 32>}, {transform_indices = @transform_18, window_bounds = array<i64: 1, 1, 32>}, {transform_indices = @transform_19, window_bounds = array<i64: 1, 8, 32>}]} {
    %c0_i32 = arith.constant 0 : i32
    %0 = arith.cmpi eq, %arg0, %c0_i32 : i32
    %1 = arith.extui %0 : i1 to i32
    %c0_i32_0 = arith.constant 0 : i32
    %2 = arith.cmpi ne, %1, %c0_i32_0 : i32
    scf.if %2 {
      %c0_100 = arith.constant 0 : index
      %c0_101 = arith.constant 0 : index
      %196 = vector.load %arg1[%c0_100, %c0_101] : memref<8x32xf32, #tpu.memory_space<vmem>>, vector<8x32xf32>
      %c0_102 = arith.constant 0 : index
      %c0_103 = arith.constant 0 : index
      %197 = vector.load %arg21[%c0_102, %c0_103] : memref<8x32xf32, #tpu.memory_space<vmem>>, vector<8x32xf32>
      tpu.vector_store %arg21[%c0_102, %c0_103], %196 {strides = array<i32>} : memref<8x32xf32, #tpu.memory_space<vmem>>, vector<8x32xf32>,
    } else {
    }
    %c0 = arith.constant 0 : index
    %c0_1 = arith.constant 0 : index
    %3 = vector.load %arg21[%c0, %c0_1] : memref<8x32xf32, #tpu.memory_space<vmem>>, vector<8x32xf32>
    %c0_2 = arith.constant 0 : index
    %c0_3 = arith.constant 0 : index
    %4 = vector.load %arg2[%c0_2, %c0_3] : memref<24x32xf32, #tpu.memory_space<vmem>>, vector<24x32xf32>
    %cst = arith.constant 3.200000e+01 : f32
    %5 = math.sqrt %cst : f32
    %cst_4 = arith.constant 1.000000e+00 : f32
    %6 = arith.divf %cst_4, %5 : f32
    %c0_5 = arith.constant 0 : index
    %c0_6 = arith.constant 0 : index
    %c0_7 = arith.constant 0 : index
    %7 = vector.load %arg5[%c0_5, %c0_6, %c0_7] : memref<1x32x96xbf16, #tpu.memory_space<vmem>>, vector<1x32x96xbf16>
    %8 = vector.shape_cast %7 : vector<1x32x96xbf16> to vector<32x96xbf16>
    %9 = arith.truncf %3 : vector<8x32xf32> to vector<8x32xbf16>
    %cst_8 = arith.constant dense<0.000000e+00> : vector<8x96xf32>
    %10 = tpu.matmul %9, %8, %cst_8 {dimension_numbers = #tpu.dot_dimension_numbers<[1], [0], [0], [1], [0, 0, 1, 1], [], []>} : vector<8x32xbf16>, vector<32x96xbf16>, vector<8x96xf32> -> vector<8x96xf32>
    %c0_9 = arith.constant 0 : index
    %c0_10 = arith.constant 0 : index
    %c0_11 = arith.constant 0 : index
    %11 = vector.load %arg6[%c0_9, %c0_10, %c0_11] : memref<1x1x96xf32, #tpu.memory_space<vmem>>, vector<1x1x96xf32>
    %12 = vector.shape_cast %11 : vector<1x1x96xf32> to vector<1x96xf32>
    %13 = vector.broadcast %12 : vector<1x96xf32> to vector<8x96xf32>
    %14 = arith.addf %10, %13 : vector<8x96xf32>
    %15 = vector.extract_strided_slice %14 {offsets = [0, 0], sizes = [8, 32], strides = [1, 1]} : vector<8x96xf32> to vector<8x32xf32>
    %16 = vector.extract_strided_slice %14 {offsets = [0, 32], sizes = [8, 32], strides = [1, 1]} : vector<8x96xf32> to vector<8x32xf32>
    %17 = vector.extract_strided_slice %14 {offsets = [0, 64], sizes = [8, 32], strides = [1, 1]} : vector<8x96xf32> to vector<8x32xf32>
    %18 = arith.truncf %15 : vector<8x32xf32> to vector<8x32xbf16>
    %19 = arith.truncf %16 : vector<8x32xf32> to vector<8x32xbf16>
    %cst_12 = arith.constant dense<0.000000e+00> : vector<8x8xf32>
    %20 = tpu.matmul %18, %19, %cst_12 {dimension_numbers = #tpu.dot_dimension_numbers<[1], [1], [0], [0], [0, 0, 1, 0], [], []>} : vector<8x32xbf16>, vector<8x32xbf16>, vector<8x8xf32> -> vector<8x8xf32>
    %21 = vector.broadcast %6 : f32 to vector<8x8xf32>
    %22 = arith.mulf %20, %21 : vector<8x8xf32>
    %c0_13 = arith.constant 0 : index
    %c0_14 = arith.constant 0 : index
    %23 = vector.load %arg3[%c0_13, %c0_14] : memref<8x8xf32, #tpu.memory_space<vmem>>, vector<8x8xf32>
    %24 = arith.addf %22, %23 : vector<8x8xf32>
    %cst_15 = arith.constant dense<0xFF800000> : vector<8xf32>
    %25 = vector.multi_reduction <maximumf>, %24, %cst_15 [1] : vector<8x8xf32> to vector<8xf32>
    %26 = vector.shape_cast %25 : vector<8xf32> to vector<8x1xf32>
    %27 = vector.broadcast %26 : vector<8x1xf32> to vector<8x8xf32>
    %28 = arith.subf %24, %27 : vector<8x8xf32>
    %29 = math.exp %28 : vector<8x8xf32>
    %cst_16 = arith.constant dense<0.000000e+00> : vector<8xf32>
    %30 = vector.multi_reduction <add>, %29, %cst_16 [1] : vector<8x8xf32> to vector<8xf32>
    %31 = vector.shape_cast %30 : vector<8xf32> to vector<8x1xf32>
    %32 = tpu.reciprocal %31 {approx = true} : vector<8x1xf32> -> vector<8x1xf32>
    %33 = vector.broadcast %32 : vector<8x1xf32> to vector<8x8xf32>
    %34 = arith.mulf %29, %33 : vector<8x8xf32>
    %35 = arith.truncf %34 : vector<8x8xf32> to vector<8x8xbf16>
    %36 = arith.truncf %17 : vector<8x32xf32> to vector<8x32xbf16>
    %cst_17 = arith.constant dense<0.000000e+00> : vector<8x32xf32>
    %37 = tpu.matmul %35, %36, %cst_17 {dimension_numbers = #tpu.dot_dimension_numbers<[1], [0], [0], [1], [0, 0, 1, 1], [], []>} : vector<8x8xbf16>, vector<8x32xbf16>, vector<8x32xf32> -> vector<8x32xf32>
    %c0_18 = arith.constant 0 : index
    %c0_19 = arith.constant 0 : index
    %c0_20 = arith.constant 0 : index
    %38 = vector.load %arg7[%c0_18, %c0_19, %c0_20] : memref<1x32x32xbf16, #tpu.memory_space<vmem>>, vector<1x32x32xbf16>
    %39 = vector.shape_cast %38 : vector<1x32x32xbf16> to vector<32x32xbf16>
    %40 = arith.truncf %37 : vector<8x32xf32> to vector<8x32xbf16>
    %cst_21 = arith.constant dense<0.000000e+00> : vector<8x32xf32>
    %41 = tpu.matmul %40, %39, %cst_21 {dimension_numbers = #tpu.dot_dimension_numbers<[1], [0], [0], [1], [0, 0, 1, 1], [], []>} : vector<8x32xbf16>, vector<32x32xbf16>, vector<8x32xf32> -> vector<8x32xf32>
    %c0_22 = arith.constant 0 : index
    %c0_23 = arith.constant 0 : index
    %c0_24 = arith.constant 0 : index
    %42 = vector.load %arg8[%c0_22, %c0_23, %c0_24] : memref<1x1x32xf32, #tpu.memory_space<vmem>>, vector<1x1x32xf32>
    %43 = vector.shape_cast %42 : vector<1x1x32xf32> to vector<1x32xf32>
    %44 = vector.broadcast %43 : vector<1x32xf32> to vector<8x32xf32>
    %45 = arith.addf %41, %44 : vector<8x32xf32>
    %46 = arith.addf %3, %45 : vector<8x32xf32>
    %c0_25 = arith.constant 0 : index
    %c0_26 = arith.constant 0 : index
    %c0_27 = arith.constant 0 : index
    %47 = vector.load %arg15[%c0_25, %c0_26, %c0_27] : memref<1x6x32xf32, #tpu.memory_space<vmem>>, vector<1x1x32xf32>
    %48 = vector.shape_cast %47 : vector<1x1x32xf32> to vector<1x32xf32>
    %c0_28 = arith.constant 0 : index
    %c1 = arith.constant 1 : index
    %c0_29 = arith.constant 0 : index
    %49 = vector.load %arg15[%c0_28, %c1, %c0_29] : memref<1x6x32xf32, #tpu.memory_space<vmem>>, vector<1x1x32xf32>
    %50 = vector.shape_cast %49 : vector<1x1x32xf32> to vector<1x32xf32>
    %cst_30 = arith.constant dense<0.000000e+00> : vector<8xf32>
    %51 = vector.multi_reduction <add>, %46, %cst_30 [1] : vector<8x32xf32> to vector<8xf32>
    %52 = vector.shape_cast %51 : vector<8xf32> to vector<8x1xf32>
    %cst_31 = arith.constant 3.200000e+01 : f32
    %53 = vector.broadcast %cst_31 : f32 to vector<8x1xf32>
    %54 = arith.divf %52, %53 : vector<8x1xf32>
    %55 = vector.broadcast %54 : vector<8x1xf32> to vector<8x32xf32>
    %56 = arith.subf %46, %55 : vector<8x32xf32>
    %57 = arith.mulf %56, %56 : vector<8x32xf32>
    %cst_32 = arith.constant dense<0.000000e+00> : vector<8xf32>
    %58 = vector.multi_reduction <add>, %57, %cst_32 [1] : vector<8x32xf32> to vector<8xf32>
    %59 = vector.shape_cast %58 : vector<8xf32> to vector<8x1xf32>
    %cst_33 = arith.constant 3.200000e+01 : f32
    %60 = vector.broadcast %cst_33 : f32 to vector<8x1xf32>
    %61 = arith.divf %59, %60 : vector<8x1xf32>
    %62 = vector.broadcast %54 : vector<8x1xf32> to vector<8x32xf32>
    %63 = arith.subf %46, %62 : vector<8x32xf32>
    %cst_34 = arith.constant 9.99999974E-6 : f32
    %64 = vector.broadcast %cst_34 : f32 to vector<8x1xf32>
    %65 = arith.addf %61, %64 : vector<8x1xf32>
    %66 = math.rsqrt %65 : vector<8x1xf32>
    %67 = vector.broadcast %66 : vector<8x1xf32> to vector<8x32xf32>
    %68 = arith.mulf %63, %67 : vector<8x32xf32>
    %69 = vector.broadcast %48 : vector<1x32xf32> to vector<8x32xf32>
    %70 = arith.mulf %68, %69 : vector<8x32xf32>
    %71 = vector.broadcast %50 : vector<1x32xf32> to vector<8x32xf32>
    %72 = arith.addf %70, %71 : vector<8x32xf32>
    %c0_35 = arith.constant 0 : index
    %c0_36 = arith.constant 0 : index
    %c0_37 = arith.constant 0 : index
    %73 = vector.load %arg9[%c0_35, %c0_36, %c0_37] : memref<1x32x32xbf16, #tpu.memory_space<vmem>>, vector<1x32x32xbf16>
    %74 = vector.shape_cast %73 : vector<1x32x32xbf16> to vector<32x32xbf16>
    %75 = arith.truncf %72 : vector<8x32xf32> to vector<8x32xbf16>
    %cst_38 = arith.constant dense<0.000000e+00> : vector<8x32xf32>
    %76 = tpu.matmul %75, %74, %cst_38 {dimension_numbers = #tpu.dot_dimension_numbers<[1], [0], [0], [1], [0, 0, 1, 1], [], []>} : vector<8x32xbf16>, vector<32x32xbf16>, vector<8x32xf32> -> vector<8x32xf32>
    %c0_39 = arith.constant 0 : index
    %c0_40 = arith.constant 0 : index
    %c0_41 = arith.constant 0 : index
    %77 = vector.load %arg10[%c0_39, %c0_40, %c0_41] : memref<1x1x32xf32, #tpu.memory_space<vmem>>, vector<1x1x32xf32>
    %78 = vector.shape_cast %77 : vector<1x1x32xf32> to vector<1x32xf32>
    %79 = vector.broadcast %78 : vector<1x32xf32> to vector<8x32xf32>
    %80 = arith.addf %76, %79 : vector<8x32xf32>
    %c0_42 = arith.constant 0 : index
    %c0_43 = arith.constant 0 : index
    %c0_44 = arith.constant 0 : index
    %81 = vector.load %arg11[%c0_42, %c0_43, %c0_44] : memref<1x32x64xbf16, #tpu.memory_space<vmem>>, vector<1x32x64xbf16>
    %82 = vector.shape_cast %81 : vector<1x32x64xbf16> to vector<32x64xbf16>
    %83 = arith.truncf %4 : vector<24x32xf32> to vector<24x32xbf16>
    %cst_45 = arith.constant dense<0.000000e+00> : vector<24x64xf32>
    %84 = tpu.matmul %83, %82, %cst_45 {dimension_numbers = #tpu.dot_dimension_numbers<[1], [0], [0], [1], [0, 0, 1, 1], [], []>} : vector<24x32xbf16>, vector<32x64xbf16>, vector<24x64xf32> -> vector<24x64xf32>
    %c0_46 = arith.constant 0 : index
    %c0_47 = arith.constant 0 : index
    %c0_48 = arith.constant 0 : index
    %85 = vector.load %arg12[%c0_46, %c0_47, %c0_48] : memref<1x1x64xf32, #tpu.memory_space<vmem>>, vector<1x1x64xf32>
    %86 = vector.shape_cast %85 : vector<1x1x64xf32> to vector<1x64xf32>
    %87 = vector.broadcast %86 : vector<1x64xf32> to vector<24x64xf32>
    %88 = arith.addf %84, %87 : vector<24x64xf32>
    %89 = vector.extract_strided_slice %88 {offsets = [0, 0], sizes = [24, 32], strides = [1, 1]} : vector<24x64xf32> to vector<24x32xf32>
    %90 = vector.extract_strided_slice %88 {offsets = [0, 32], sizes = [24, 32], strides = [1, 1]} : vector<24x64xf32> to vector<24x32xf32>
    %91 = arith.truncf %80 : vector<8x32xf32> to vector<8x32xbf16>
    %92 = arith.truncf %89 : vector<24x32xf32> to vector<24x32xbf16>
    %cst_49 = arith.constant dense<0.000000e+00> : vector<8x24xf32>
    %93 = tpu.matmul %91, %92, %cst_49 {dimension_numbers = #tpu.dot_dimension_numbers<[1], [1], [0], [0], [0, 0, 1, 0], [], []>} : vector<8x32xbf16>, vector<24x32xbf16>, vector<8x24xf32> -> vector<8x24xf32>
    %94 = vector.broadcast %6 : f32 to vector<8x24xf32>
    %95 = arith.mulf %93, %94 : vector<8x24xf32>
    %c0_50 = arith.constant 0 : index
    %c0_51 = arith.constant 0 : index
    %96 = vector.load %arg4[%c0_50, %c0_51] : memref<1x24xf32, #tpu.memory_space<vmem>>, vector<1x24xf32>
    %97 = vector.broadcast %96 : vector<1x24xf32> to vector<8x24xf32>
    %98 = arith.addf %95, %97 : vector<8x24xf32>
    %cst_52 = arith.constant dense<0xFF800000> : vector<8xf32>
    %99 = vector.multi_reduction <maximumf>, %98, %cst_52 [1] : vector<8x24xf32> to vector<8xf32>
    %100 = vector.shape_cast %99 : vector<8xf32> to vector<8x1xf32>
    %101 = vector.broadcast %100 : vector<8x1xf32> to vector<8x24xf32>
    %102 = arith.subf %98, %101 : vector<8x24xf32>
    %103 = math.exp %102 : vector<8x24xf32>
    %cst_53 = arith.constant dense<0.000000e+00> : vector<8xf32>
    %104 = vector.multi_reduction <add>, %103, %cst_53 [1] : vector<8x24xf32> to vector<8xf32>
    %105 = vector.shape_cast %104 : vector<8xf32> to vector<8x1xf32>
    %106 = tpu.reciprocal %105 {approx = true} : vector<8x1xf32> -> vector<8x1xf32>
    %107 = vector.broadcast %106 : vector<8x1xf32> to vector<8x24xf32>
    %108 = arith.mulf %103, %107 : vector<8x24xf32>
    %109 = arith.truncf %108 : vector<8x24xf32> to vector<8x24xbf16>
    %110 = arith.truncf %90 : vector<24x32xf32> to vector<24x32xbf16>
    %cst_54 = arith.constant dense<0.000000e+00> : vector<8x32xf32>
    %111 = tpu.matmul %109, %110, %cst_54 {dimension_numbers = #tpu.dot_dimension_numbers<[1], [0], [0], [1], [0, 0, 1, 1], [], []>} : vector<8x24xbf16>, vector<24x32xbf16>, vector<8x32xf32> -> vector<8x32xf32>
    %c0_55 = arith.constant 0 : index
    %c0_56 = arith.constant 0 : index
    %c0_57 = arith.constant 0 : index
    %112 = vector.load %arg13[%c0_55, %c0_56, %c0_57] : memref<1x32x32xbf16, #tpu.memory_space<vmem>>, vector<1x32x32xbf16>
    %113 = vector.shape_cast %112 : vector<1x32x32xbf16> to vector<32x32xbf16>
    %114 = arith.truncf %111 : vector<8x32xf32> to vector<8x32xbf16>
    %cst_58 = arith.constant dense<0.000000e+00> : vector<8x32xf32>
    %115 = tpu.matmul %114, %113, %cst_58 {dimension_numbers = #tpu.dot_dimension_numbers<[1], [0], [0], [1], [0, 0, 1, 1], [], []>} : vector<8x32xbf16>, vector<32x32xbf16>, vector<8x32xf32> -> vector<8x32xf32>
    %c0_59 = arith.constant 0 : index
    %c0_60 = arith.constant 0 : index
    %c0_61 = arith.constant 0 : index
    %116 = vector.load %arg14[%c0_59, %c0_60, %c0_61] : memref<1x1x32xf32, #tpu.memory_space<vmem>>, vector<1x1x32xf32>
    %117 = vector.shape_cast %116 : vector<1x1x32xf32> to vector<1x32xf32>
    %118 = vector.broadcast %117 : vector<1x32xf32> to vector<8x32xf32>
    %119 = arith.addf %115, %118 : vector<8x32xf32>
    %120 = arith.addf %72, %119 : vector<8x32xf32>
    %c0_62 = arith.constant 0 : index
    %c2 = arith.constant 2 : index
    %c0_63 = arith.constant 0 : index
    %121 = vector.load %arg15[%c0_62, %c2, %c0_63] : memref<1x6x32xf32, #tpu.memory_space<vmem>>, vector<1x1x32xf32>
    %122 = vector.shape_cast %121 : vector<1x1x32xf32> to vector<1x32xf32>
    %c0_64 = arith.constant 0 : index
    %c3 = arith.constant 3 : index
    %c0_65 = arith.constant 0 : index
    %123 = vector.load %arg15[%c0_64, %c3, %c0_65] : memref<1x6x32xf32, #tpu.memory_space<vmem>>, vector<1x1x32xf32>
    %124 = vector.shape_cast %123 : vector<1x1x32xf32> to vector<1x32xf32>
    %cst_66 = arith.constant dense<0.000000e+00> : vector<8xf32>
    %125 = vector.multi_reduction <add>, %120, %cst_66 [1] : vector<8x32xf32> to vector<8xf32>
    %126 = vector.shape_cast %125 : vector<8xf32> to vector<8x1xf32>
    %cst_67 = arith.constant 3.200000e+01 : f32
    %127 = vector.broadcast %cst_67 : f32 to vector<8x1xf32>
    %128 = arith.divf %126, %127 : vector<8x1xf32>
    %129 = vector.broadcast %128 : vector<8x1xf32> to vector<8x32xf32>
    %130 = arith.subf %120, %129 : vector<8x32xf32>
    %131 = arith.mulf %130, %130 : vector<8x32xf32>
    %cst_68 = arith.constant dense<0.000000e+00> : vector<8xf32>
    %132 = vector.multi_reduction <add>, %131, %cst_68 [1] : vector<8x32xf32> to vector<8xf32>
    %133 = vector.shape_cast %132 : vector<8xf32> to vector<8x1xf32>
    %cst_69 = arith.constant 3.200000e+01 : f32
    %134 = vector.broadcast %cst_69 : f32 to vector<8x1xf32>
    %135 = arith.divf %133, %134 : vector<8x1xf32>
    %136 = vector.broadcast %128 : vector<8x1xf32> to vector<8x32xf32>
    %137 = arith.subf %120, %136 : vector<8x32xf32>
    %cst_70 = arith.constant 9.99999974E-6 : f32
    %138 = vector.broadcast %cst_70 : f32 to vector<8x1xf32>
    %139 = arith.addf %135, %138 : vector<8x1xf32>
    %140 = math.rsqrt %139 : vector<8x1xf32>
    %141 = vector.broadcast %140 : vector<8x1xf32> to vector<8x32xf32>
    %142 = arith.mulf %137, %141 : vector<8x32xf32>
    %143 = vector.broadcast %122 : vector<1x32xf32> to vector<8x32xf32>
    %144 = arith.mulf %142, %143 : vector<8x32xf32>
    %145 = vector.broadcast %124 : vector<1x32xf32> to vector<8x32xf32>
    %146 = arith.addf %144, %145 : vector<8x32xf32>
    %c0_71 = arith.constant 0 : index
    %c0_72 = arith.constant 0 : index
    %c0_73 = arith.constant 0 : index
    %147 = vector.load %arg16[%c0_71, %c0_72, %c0_73] : memref<1x32x64xbf16, #tpu.memory_space<vmem>>, vector<1x32x64xbf16>
    %148 = vector.shape_cast %147 : vector<1x32x64xbf16> to vector<32x64xbf16>
    %149 = arith.truncf %146 : vector<8x32xf32> to vector<8x32xbf16>
    %cst_74 = arith.constant dense<0.000000e+00> : vector<8x64xf32>
    %150 = tpu.matmul %149, %148, %cst_74 {dimension_numbers = #tpu.dot_dimension_numbers<[1], [0], [0], [1], [0, 0, 1, 1], [], []>} : vector<8x32xbf16>, vector<32x64xbf16>, vector<8x64xf32> -> vector<8x64xf32>
    %c0_75 = arith.constant 0 : index
    %c0_76 = arith.constant 0 : index
    %c0_77 = arith.constant 0 : index
    %151 = vector.load %arg17[%c0_75, %c0_76, %c0_77] : memref<1x1x64xf32, #tpu.memory_space<vmem>>, vector<1x1x64xf32>
    %152 = vector.shape_cast %151 : vector<1x1x64xf32> to vector<1x64xf32>
    %153 = vector.broadcast %152 : vector<1x64xf32> to vector<8x64xf32>
    %154 = arith.addf %150, %153 : vector<8x64xf32>
    %cst_78 = arith.constant 0.000000e+00 : f32
    %155 = vector.broadcast %cst_78 : f32 to vector<8x64xf32>
    %156 = arith.maximumf %154, %155 : vector<8x64xf32>
    %c0_79 = arith.constant 0 : index
    %c0_80 = arith.constant 0 : index
    %c0_81 = arith.constant 0 : index
    %157 = vector.load %arg18[%c0_79, %c0_80, %c0_81] : memref<1x64x32xbf16, #tpu.memory_space<vmem>>, vector<1x64x32xbf16>
    %158 = vector.shape_cast %157 : vector<1x64x32xbf16> to vector<64x32xbf16>
    %159 = arith.truncf %156 : vector<8x64xf32> to vector<8x64xbf16>
    %cst_82 = arith.constant dense<0.000000e+00> : vector<8x32xf32>
    %160 = tpu.matmul %159, %158, %cst_82 {dimension_numbers = #tpu.dot_dimension_numbers<[1], [0], [0], [1], [0, 0, 1, 1], [], []>} : vector<8x64xbf16>, vector<64x32xbf16>, vector<8x32xf32> -> vector<8x32xf32>
    %c0_83 = arith.constant 0 : index
    %c0_84 = arith.constant 0 : index
    %c0_85 = arith.constant 0 : index
    %161 = vector.load %arg19[%c0_83, %c0_84, %c0_85] : memref<1x1x32xf32, #tpu.memory_space<vmem>>, vector<1x1x32xf32>
    %162 = vector.shape_cast %161 : vector<1x1x32xf32> to vector<1x32xf32>
    %163 = vector.broadcast %162 : vector<1x32xf32> to vector<8x32xf32>
    %164 = arith.addf %160, %163 : vector<8x32xf32>
    %165 = arith.addf %146, %164 : vector<8x32xf32>
    %c0_86 = arith.constant 0 : index
    %c4 = arith.constant 4 : index
    %c0_87 = arith.constant 0 : index
    %166 = vector.load %arg15[%c0_86, %c4, %c0_87] : memref<1x6x32xf32, #tpu.memory_space<vmem>>, vector<1x1x32xf32>
    %167 = vector.shape_cast %166 : vector<1x1x32xf32> to vector<1x32xf32>
    %c0_88 = arith.constant 0 : index
    %c5 = arith.constant 5 : index
    %c0_89 = arith.constant 0 : index
    %168 = vector.load %arg15[%c0_88, %c5, %c0_89] : memref<1x6x32xf32, #tpu.memory_space<vmem>>, vector<1x1x32xf32>
    %169 = vector.shape_cast %168 : vector<1x1x32xf32> to vector<1x32xf32>
    %cst_90 = arith.constant dense<0.000000e+00> : vector<8xf32>
    %170 = vector.multi_reduction <add>, %165, %cst_90 [1] : vector<8x32xf32> to vector<8xf32>
    %171 = vector.shape_cast %170 : vector<8xf32> to vector<8x1xf32>
    %cst_91 = arith.constant 3.200000e+01 : f32
    %172 = vector.broadcast %cst_91 : f32 to vector<8x1xf32>
    %173 = arith.divf %171, %172 : vector<8x1xf32>
    %174 = vector.broadcast %173 : vector<8x1xf32> to vector<8x32xf32>
    %175 = arith.subf %165, %174 : vector<8x32xf32>
    %176 = arith.mulf %175, %175 : vector<8x32xf32>
    %cst_92 = arith.constant dense<0.000000e+00> : vector<8xf32>
    %177 = vector.multi_reduction <add>, %176, %cst_92 [1] : vector<8x32xf32> to vector<8xf32>
    %178 = vector.shape_cast %177 : vector<8xf32> to vector<8x1xf32>
    %cst_93 = arith.constant 3.200000e+01 : f32
    %179 = vector.broadcast %cst_93 : f32 to vector<8x1xf32>
    %180 = arith.divf %178, %179 : vector<8x1xf32>
    %181 = vector.broadcast %173 : vector<8x1xf32> to vector<8x32xf32>
    %182 = arith.subf %165, %181 : vector<8x32xf32>
    %cst_94 = arith.constant 9.99999974E-6 : f32
    %183 = vector.broadcast %cst_94 : f32 to vector<8x1xf32>
    %184 = arith.addf %180, %183 : vector<8x1xf32>
    %185 = math.rsqrt %184 : vector<8x1xf32>
    %186 = vector.broadcast %185 : vector<8x1xf32> to vector<8x32xf32>
    %187 = arith.mulf %182, %186 : vector<8x32xf32>
    %188 = vector.broadcast %167 : vector<1x32xf32> to vector<8x32xf32>
    %189 = arith.mulf %187, %188 : vector<8x32xf32>
    %190 = vector.broadcast %169 : vector<1x32xf32> to vector<8x32xf32>
    %191 = arith.addf %189, %190 : vector<8x32xf32>
    %c0_95 = arith.constant 0 : index
    %c0_96 = arith.constant 0 : index
    %192 = vector.load %arg21[%c0_95, %c0_96] : memref<8x32xf32, #tpu.memory_space<vmem>>, vector<8x32xf32>
    tpu.vector_store %arg21[%c0_95, %c0_96], %191 {strides = array<i32>} : memref<8x32xf32, #tpu.memory_space<vmem>>, vector<8x32xf32>,
    %c0_97 = arith.constant 0 : index
    %c0_98 = arith.constant 0 : index
    %c0_99 = arith.constant 0 : index
    %193 = vector.load %arg20[%c0_97, %c0_98, %c0_99] : memref<1x8x32xf32, #tpu.memory_space<vmem>>, vector<1x8x32xf32>
    %194 = vector.shape_cast %193 : vector<1x8x32xf32> to vector<8x32xf32>
    %195 = vector.shape_cast %191 : vector<8x32xf32> to vector<1x8x32xf32>
    tpu.vector_store %arg20[%c0_97, %c0_98, %c0_99], %195 {strides = array<i32>} : memref<1x8x32xf32, #tpu.memory_space<vmem>>, vector<1x8x32xf32>,
    return
  }
  func.func @transform_0(%arg0: i32) -> (i32, i32) {
    %c0_i32 = arith.constant 0 : i32
    %c0_i32_0 = arith.constant 0 : i32
    %c0_i32_1 = arith.constant 0 : i32
    return %c0_i32, %c0_i32_0 : i32, i32
  }
  func.func @transform_1(%arg0: i32) -> (i32, i32) {
    %c0_i32 = arith.constant 0 : i32
    %c0_i32_0 = arith.constant 0 : i32
    %c0_i32_1 = arith.constant 0 : i32
    return %c0_i32, %c0_i32_0 : i32, i32
  }
  func.func @transform_2(%arg0: i32) -> (i32, i32) {
    %c0_i32 = arith.constant 0 : i32
    %c0_i32_0 = arith.constant 0 : i32
    %c0_i32_1 = arith.constant 0 : i32
    return %c0_i32, %c0_i32_0 : i32, i32
  }
  func.func @transform_3(%arg0: i32) -> (i32, i32) {
    %c0_i32 = arith.constant 0 : i32
    %c0_i32_0 = arith.constant 0 : i32
    %c0_i32_1 = arith.constant 0 : i32
    return %c0_i32, %c0_i32_0 : i32, i32
  }
  func.func @transform_4(%arg0: i32) -> (i32, i32, i32) {
    %c0_i32 = arith.constant 0 : i32
    %c0_i32_0 = arith.constant 0 : i32
    %c0_i32_1 = arith.constant 0 : i32
    return %arg0, %c0_i32, %c0_i32_0 : i32, i32, i32
  }
  func.func @transform_5(%arg0: i32) -> (i32, i32, i32) {
    %c0_i32 = arith.constant 0 : i32
    %c0_i32_0 = arith.constant 0 : i32
    %c0_i32_1 = arith.constant 0 : i32
    return %arg0, %c0_i32, %c0_i32_0 : i32, i32, i32
  }
  func.func @transform_6(%arg0: i32) -> (i32, i32, i32) {
    %c0_i32 = arith.constant 0 : i32
    %c0_i32_0 = arith.constant 0 : i32
    %c0_i32_1 = arith.constant 0 : i32
    return %arg0, %c0_i32, %c0_i32_0 : i32, i32, i32
  }
  func.func @transform_7(%arg0: i32) -> (i32, i32, i32) {
    %c0_i32 = arith.constant 0 : i32
    %c0_i32_0 = arith.constant 0 : i32
    %c0_i32_1 = arith.constant 0 : i32
    return %arg0, %c0_i32, %c0_i32_0 : i32, i32, i32
  }
  func.func @transform_8(%arg0: i32) -> (i32, i32, i32) {
    %c0_i32 = arith.constant 0 : i32
    %c0_i32_0 = arith.constant 0 : i32
    %c0_i32_1 = arith.constant 0 : i32
    return %arg0, %c0_i32, %c0_i32_0 : i32, i32, i32
  }
  func.func @transform_9(%arg0: i32) -> (i32, i32, i32) {
    %c0_i32 = arith.constant 0 : i32
    %c0_i32_0 = arith.constant 0 : i32
    %c0_i32_1 = arith.constant 0 : i32
    return %arg0, %c0_i32, %c0_i32_0 : i32, i32, i32
  }
  func.func @transform_10(%arg0: i32) -> (i32, i32, i32) {
    %c0_i32 = arith.constant 0 : i32
    %c0_i32_0 = arith.constant 0 : i32
    %c0_i32_1 = arith.constant 0 : i32
    return %arg0, %c0_i32, %c0_i32_0 : i32, i32, i32
  }
  func.func @transform_11(%arg0: i32) -> (i32, i32, i32) {
    %c0_i32 = arith.constant 0 : i32
    %c0_i32_0 = arith.constant 0 : i32
    %c0_i32_1 = arith.constant 0 : i32
    return %arg0, %c0_i32, %c0_i32_0 : i32, i32, i32
  }
  func.func @transform_12(%arg0: i32) -> (i32, i32, i32) {
    %c0_i32 = arith.constant 0 : i32
    %c0_i32_0 = arith.constant 0 : i32
    %c0_i32_1 = arith.constant 0 : i32
    return %arg0, %c0_i32, %c0_i32_0 : i32, i32, i32
  }
  func.func @transform_13(%arg0: i32) -> (i32, i32, i32) {
    %c0_i32 = arith.constant 0 : i32
    %c0_i32_0 = arith.constant 0 : i32
    %c0_i32_1 = arith.constant 0 : i32
    return %arg0, %c0_i32, %c0_i32_0 : i32, i32, i32
  }
  func.func @transform_14(%arg0: i32) -> (i32, i32, i32) {
    %c0_i32 = arith.constant 0 : i32
    %c0_i32_0 = arith.constant 0 : i32
    %c0_i32_1 = arith.constant 0 : i32
    return %arg0, %c0_i32, %c0_i32_0 : i32, i32, i32
  }
  func.func @transform_15(%arg0: i32) -> (i32, i32, i32) {
    %c0_i32 = arith.constant 0 : i32
    %c0_i32_0 = arith.constant 0 : i32
    %c0_i32_1 = arith.constant 0 : i32
    return %arg0, %c0_i32, %c0_i32_0 : i32, i32, i32
  }
  func.func @transform_16(%arg0: i32) -> (i32, i32, i32) {
    %c0_i32 = arith.constant 0 : i32
    %c0_i32_0 = arith.constant 0 : i32
    %c0_i32_1 = arith.constant 0 : i32
    return %arg0, %c0_i32, %c0_i32_0 : i32, i32, i32
  }
  func.func @transform_17(%arg0: i32) -> (i32, i32, i32) {
    %c0_i32 = arith.constant 0 : i32
    %c0_i32_0 = arith.constant 0 : i32
    %c0_i32_1 = arith.constant 0 : i32
    return %arg0, %c0_i32, %c0_i32_0 : i32, i32, i32
  }
  func.func @transform_18(%arg0: i32) -> (i32, i32, i32) {
    %c0_i32 = arith.constant 0 : i32
    %c0_i32_0 = arith.constant 0 : i32
    %c0_i32_1 = arith.constant 0 : i32
    return %arg0, %c0_i32, %c0_i32_0 : i32, i32, i32
  }
  func.func @transform_19(%arg0: i32) -> (i32, i32, i32) {
    %c0_i32 = arith.constant 0 : i32
    %c0_i32_0 = arith.constant 0 : i32
    %c0_i32_1 = arith.constant 0 : i32
    return %arg0, %c0_i32, %c0_i32_0 : i32, i32, i32
  }
}

</mosaic_0001>

<llo_original>
// kernel: squeeze.7
$region0: #{squeeze.7}
  %s0 = inlined_call_operand.vmem [shape: pred[1,4,4], index: 0, kind: input, shape index: {}]
  %s1 = inlined_call_operand.vmem [shape: pred[16], index: 1, kind: output, shape index: {}]
  $region1: #{squeeze.7} parent=0
    #allocation0 [shape = 'u8[4096]{0}', space=vmem, size = 0x1000, scoped, tag = 'scoped mem for output reshape']
    #allocation1 [shape = 'u8[4096]{0}', space=vmem, size = 0x1000, scoped, tag = 'scoped mem for input reshape']
    %s3 = smul.u32 1, 4
    %s4 = sshll.u32 1, %s3
    %s5 = ssub.s32 %s4, 1
    %s6 = sand.u32 %s5, 15
    %p7 = scmp.ne.s32.totalorder %s6, 0
    %s8 = scalar_select %p7, 1, 0
    %s9 = sand.u32 %s5, 240
    %p10 = scmp.ne.s32.totalorder %s9, 0
    %s11 = scalar_select %p10, 2, 0
    %s12 = sor.u32 %s8, %s11
    %v13 = vld [vmem:[%s0] sm:%s12]
    %v14 = vunpack.c.0.s8 %v13
    %v15 = vunpack.c.1.s8 %v13
    %v16 = vunpack.c.2.s8 %v13
    %v17 = vunpack.c.3.s8 %v13
    %18 = vst [vmem:[#allocation1] sm:%s5] %v14
    %v19 = vld [vmem:[#allocation1] sm:$0x1]
    %vm20 = vcmask 31744
    %21 = vst.msk [vmem:[#allocation0] sm:$0x1] %vm20, %v19
    %s22 = scalar_lea.vmem [#allocation1], 3
    %v23 = vld [vmem:[%s22] sm:$0x1]
    %24 = vrot.lane.b32.xlu0 %v23, 12
    %v25 = vpop.permute.xlu0 %24
    %vm26 = vcmask 130144
    %27 = vst.msk [vmem:[#allocation0] sm:$0x1] %vm26, %v25
    %s28 = scalar_lea.vmem [#allocation1], 2
    %v29 = vld [vmem:[%s28] sm:$0x1]
    %30 = vrot.lane.b32.xlu0 %v29, 8
    %v31 = vpop.permute.xlu0 %30
    %vm32 = vcmask 97344
    %33 = vst.msk [vmem:[#allocation0] sm:$0x1] %vm32, %v31
    %s34 = scalar_lea.vmem [#allocation1], 1
    %v35 = vld [vmem:[%s34] sm:$0x1]
    %36 = vrot.lane.b32.xlu0 %v35, 4
    %v37 = vpop.permute.xlu0 %36
    %vm38 = vcmask 64544
    %39 = vst.msk [vmem:[#allocation0] sm:$0x1] %vm38, %v37
    %s41 = smul.u32 1, 4
    %s42 = sshll.u32 1, %s41
    %s43 = ssub.s32 %s42, 1
    %s44 = sshrl.u32 %s41, 2
    %v45 = vld [vmem:[#allocation0] sm:%s43]
    %s46 = sshll.u32 1, %s44
    %s47 = ssub.s32 %s46, 1
    %v48 = vpack.c.b16 0, %v45
    %v49 = vpack.c.b8 0, %v48
    %50 = vst [vmem:[%s1] sm:%s47] %v49

// kernel: custom-call
$region0: #{custom-call}
  %s0 = inlined_call_operand.vmem [shape: f32[2,8,2], index: 0, kind: output, shape index: {}]

// kernel: general_decoder_forward.1
$region0: #{general_decoder_forward.1}
  #allocation0 [shape = 'u32[]', space=smem, size = 0x4, offset = 0x4, fixed_abs, tag = 'smem constant byte address 0x4 - core index']
  #allocation1 [shape = 'u32[144,128]{1,0:T(1,128)}', space=vmem, size = 0x12000, scoped, tag = 'internal scratch']
  #allocation2 [shape = 'f32[8,32]{1,0:T(8,128)}', space=vmem, size = 0x1000, scoped, tag = 'scratch operand']
  %s0 = inlined_call_operand.hbm [shape: f32[8,32], index: 0, kind: input, shape index: {}]
  %s1 = inlined_call_operand.vmem [shape: f32[24,32], index: 1, kind: input, shape index: {}]
  %s2 = inlined_call_operand.vmem [shape: f32[8,8], index: 2, kind: input, shape index: {}]
  %s3 = inlined_call_operand.vmem [shape: f32[1,24], index: 3, kind: input, shape index: {}]
  %s4 = inlined_call_operand.vmem [shape: bf16[2,32,96], index: 4, kind: input, shape index: {}]
  %s5 = inlined_call_operand.hbm [shape: f32[2,1,96], index: 5, kind: input, shape index: {}]
  %s6 = inlined_call_operand.vmem [shape: bf16[2,32,32], index: 6, kind: input, shape index: {}]
  %s7 = inlined_call_operand.hbm [shape: f32[2,1,32], index: 7, kind: input, shape index: {}]
  %s8 = inlined_call_operand.vmem [shape: bf16[2,32,32], index: 8, kind: input, shape index: {}]
  %s9 = inlined_call_operand.hbm [shape: f32[2,1,32], index: 9, kind: input, shape index: {}]
  %s10 = inlined_call_operand.vmem [shape: bf16[2,32,64], index: 10, kind: input, shape index: {}]
  %s11 = inlined_call_operand.hbm [shape: f32[2,1,64], index: 11, kind: input, shape index: {}]
  %s12 = inlined_call_operand.vmem [shape: bf16[2,32,32], index: 12, kind: input, shape index: {}]
  %s13 = inlined_call_operand.hbm [shape: f32[2,1,32], index: 13, kind: input, shape index: {}]
  %s14 = inlined_call_operand.vmem [shape: f32[2,6,32], index: 14, kind: input, shape index: {}]
  %s15 = inlined_call_operand.vmem [shape: bf16[2,32,64], index: 15, kind: input, shape index: {}]
  %s16 = inlined_call_operand.hbm [shape: f32[2,1,64], index: 16, kind: input, shape index: {}]
  %s17 = inlined_call_operand.vmem [shape: bf16[2,64,32], index: 17, kind: input, shape index: {}]
  %s18 = inlined_call_operand.hbm [shape: f32[2,1,32], index: 18, kind: input, shape index: {}]
  %s19 = inlined_call_operand.vmem [shape: f32[2,8,32], index: 19, kind: output, shape index: {}]
  %s20 = sld [smem:[#allocation0]]
  $region145: #{general_decoder_forward.1} parent=0
    _
  %s22 = ssub.s32 1, %s20
  %s23 = scalar_select 0, %s22, %s20
  $region1: #{general_decoder_forward.1} parent=0
    #allocation3 [shape = 'u8[4096]{0}', space=vmem, size = 0x1000, scoped, tag = 'input window, operand 0, single buffered']
    #allocation4 [shape = 's32[2]{0}', space=sflag, size = 0x8, scoped, tag = 'scoped memory for general_decoder_forward.1']
    #allocation5 [shape = 'u8[1024]{0}', space=vmem, size = 0x400, scoped, tag = 'input window, operand 5']
    #allocation6 [shape = 's32[2]{0}', space=sflag, size = 0x8, scoped, tag = 'scoped memory for general_decoder_forward.1']
    #allocation7 [shape = 'u8[1024]{0}', space=vmem, size = 0x400, scoped, tag = 'input window, operand 7']
    #allocation8 [shape = 'u8[1024]{0}', space=vmem, size = 0x400, scoped, tag = 'input window, operand 9']
    #allocation9 [shape = 's32[2]{0}', space=sflag, size = 0x8, scoped, tag = 'scoped memory for general_decoder_forward.1']
    #allocation10 [shape = 'u8[1024]{0}', space=vmem, size = 0x400, scoped, tag = 'input window, operand 11']
    #allocation11 [shape = 'u8[1024]{0}', space=vmem, size = 0x400, scoped, tag = 'input window, operand 13']
    #allocation12 [shape = 's32[2]{0}', space=sflag, size = 0x8, scoped, tag = 'scoped memory for general_decoder_forward.1']
    #allocation13 [shape = 'u8[1024]{0}', space=vmem, size = 0x400, scoped, tag = 'input window, operand 16']
    #allocation14 [shape = 'u8[1024]{0}', space=vmem, size = 0x400, scoped, tag = 'input window, operand 18']
    #allocation15 [shape = 's32[2]{0}', space=sflag, size = 0x8, scoped, tag = 'scoped memory for general_decoder_forward.1']
    %24 = vsyncpa [#allocation4], 0
    %25 = vsyncpa [#allocation6], 0
    %s26 = scalar_lea.sflag [#allocation6], 1
    %27 = vsyncpa %s26, 0
    %28 = vsyncpa [#allocation9], 0
    %s29 = scalar_lea.sflag [#allocation9], 1
    %30 = vsyncpa %s29, 0
    %31 = vsyncpa [#allocation12], 0
    %s32 = scalar_lea.sflag [#allocation12], 1
    %33 = vsyncpa %s32, 0
    %34 = vsyncpa [#allocation15], 0
    %s35 = scalar_lea.sflag [#allocation15], 1
    %36 = vsyncpa %s35, 0
    loop: start=0, step=1, limit=4
    $region2: #{general_decoder_forward.1} parent=1 // loop_pre_header
      _
    $region3: #{general_decoder_forward.1} parent=1 // loop_header
      %s38 = sphi 0, %s42
      %p39 = scmp.ge.s32.totalorder %s38, 4
      %s46 = sphi 0, %s46
      %s48 = sphi 0, %s46
      %s49 = sphi 0, %s48
      %s63 = sphi 0, %s49
      %s67 = sphi 0, %s67
      %s69 = sphi 0, %s67
      %s70 = sphi 0, %s69
      %s84 = sphi 0, %s70
      %s88 = sphi 0, %s88
      %s90 = sphi 0, %s88
      %s91 = sphi 0, %s90
      %s105 = sphi 0, %s91
      %s109 = sphi 0, %s109
      %s111 = sphi 0, %s109
      %s112 = sphi 0, %s111
      %s126 = sphi 0, %s112
      %s132 = sphi 0, %s134
      %s135 = sphi 0, %s132
      %s136 = sphi 0, %s135
      %s152 = sphi 0, %s136
      %s158 = sphi 0, %s160
      %s161 = sphi 0, %s158
      %s162 = sphi 0, %s161
      %s178 = sphi 0, %s162
      %s184 = sphi 0, %s186
      %s187 = sphi 0, %s184
      %s188 = sphi 0, %s187
      %s204 = sphi 0, %s188
      %s210 = sphi 0, %s212
      %s213 = sphi 0, %s210
      %s214 = sphi 0, %s213
      %s230 = sphi 0, %s214
      %s236 = sphi 0, %s238
      %s239 = sphi 0, %s236
      %s240 = sphi 0, %s239
      %s256 = sphi 0, %s240
      %s262 = sphi 0, %s264
      %s265 = sphi 0, %s262
      %s266 = sphi 0, %s265
      %s282 = sphi 0, %s266
      %s288 = sphi 0, %s290
      %s291 = sphi 0, %s288
      %s292 = sphi 0, %s291
      %s308 = sphi 0, %s292
      %s314 = sphi 0, %s316
      %s317 = sphi 0, %s314
      %s318 = sphi 0, %s317
      %s334 = sphi 0, %s318
      %s340 = sphi 0, %s342
      %s343 = sphi 0, %s340
      %s344 = sphi 0, %s343
      %s360 = sphi 0, %s344
      %s366 = sphi 0, %s368
      %s369 = sphi 0, %s366
      %s370 = sphi 0, %s369
      %s386 = sphi 0, %s370
      %s392 = sphi 0, %s394
      %s395 = sphi 0, %s392
      %s396 = sphi 0, %s395
      %s412 = sphi 0, %s396
      %s418 = sphi 0, %s420
      %s421 = sphi 0, %s418
      %s422 = sphi 0, %s421
      %s438 = sphi 0, %s422
      %s444 = sphi 0, %s446
      %s447 = sphi 0, %s444
      %s448 = sphi 0, %s447
      %s464 = sphi 0, %s448
      %s470 = sphi 0, %s472
      %s473 = sphi 0, %s470
      %s474 = sphi 0, %s473
      %s490 = sphi 0, %s474
      %s496 = sphi 0, %s498
      %s499 = sphi 0, %s496
      %s500 = sphi 0, %s499
      %s516 = sphi 0, %s500
      %s522 = sphi 0, %s524
      %s525 = sphi 0, %s522
      %s526 = sphi 0, %s525
      %s542 = sphi 0, %s526
    $region4: #{general_decoder_forward.1} parent=1 // loop_header_branch
      %41 = sbr.rel (%p39) target = $region8
    $region5: #{general_decoder_forward.1} parent=1 // loop_body
      %s43 = ssub.s32 %s38, 1
      %s44 = ssub.s32 %s38, 2
      %s45 = sadd.s32 %s38, 1
      %s47 = sadd.s32 %s46, 1
      %p50 = scmp.eq.s32.totalorder %s38, 1
      %p51 = scmp.ne.s32.totalorder %s46, %s48
      %p52 = scmp.eq.s32.totalorder %s38, 0
      %p53 = por %p51, %p52
      %p54 = scmp.ne.s32.totalorder %s46, %s48
      %p55 = scmp.eq.s32.totalorder %s43, 1
      %p56 = por %p54, %p55
      %p57 = scmp.ne.s32.totalorder %s48, %s49
      %p58 = scmp.eq.s32.totalorder %s43, 0
      %p59 = por %p57, %p58
      %p60 = scmp.ne.s32.totalorder %s48, %s49
      %p61 = scmp.eq.s32.totalorder %s44, 1
      %p62 = por %p60, %p61
      %p64 = scmp.ne.s32.totalorder %s49, %s63
      %p65 = scmp.eq.s32.totalorder %s44, 0
      %p66 = por %p64, %p65
      %s68 = sadd.s32 %s67, 1
      %p71 = scmp.eq.s32.totalorder %s38, 1
      %p72 = scmp.ne.s32.totalorder %s67, %s69
      %p73 = scmp.eq.s32.totalorder %s38, 0
      %p74 = por %p72, %p73
      %p75 = scmp.ne.s32.totalorder %s67, %s69
      %p76 = scmp.eq.s32.totalorder %s43, 1
      %p77 = por %p75, %p76
      %p78 = scmp.ne.s32.totalorder %s69, %s70
      %p79 = scmp.eq.s32.totalorder %s43, 0
      %p80 = por %p78, %p79
      %p81 = scmp.ne.s32.totalorder %s69, %s70
      %p82 = scmp.eq.s32.totalorder %s44, 1
      %p83 = por %p81, %p82
      %p85 = scmp.ne.s32.totalorder %s70, %s84
      %p86 = scmp.eq.s32.totalorder %s44, 0
      %p87 = por %p85, %p86
      %s89 = sadd.s32 %s88, 1
      %p92 = scmp.eq.s32.totalorder %s38, 1
      %p93 = scmp.ne.s32.totalorder %s88, %s90
      %p94 = scmp.eq.s32.totalorder %s38, 0
      %p95 = por %p93, %p94
      %p96 = scmp.ne.s32.totalorder %s88, %s90
      %p97 = scmp.eq.s32.totalorder %s43, 1
      %p98 = por %p96, %p97
      %p99 = scmp.ne.s32.totalorder %s90, %s91
      %p100 = scmp.eq.s32.totalorder %s43, 0
      %p101 = por %p99, %p100
      %p102 = scmp.ne.s32.totalorder %s90, %s91
      %p103 = scmp.eq.s32.totalorder %s44, 1
      %p104 = por %p102, %p103
      %p106 = scmp.ne.s32.totalorder %s91, %s105
      %p107 = scmp.eq.s32.totalorder %s44, 0
      %p108 = por %p106, %p107
      %s110 = sadd.s32 %s109, 1
      %p113 = scmp.eq.s32.totalorder %s38, 1
      %p114 = scmp.ne.s32.totalorder %s109, %s111
      %p115 = scmp.eq.s32.totalorder %s38, 0
      %p116 = por %p114, %p115
      %p117 = scmp.ne.s32.totalorder %s109, %s111
      %p118 = scmp.eq.s32.totalorder %s43, 1
      %p119 = por %p117, %p118
      %p120 = scmp.ne.s32.totalorder %s111, %s112
      %p121 = scmp.eq.s32.totalorder %s43, 0
      %p122 = por %p120, %p121
      %p123 = scmp.ne.s32.totalorder %s111, %s112
      %p124 = scmp.eq.s32.totalorder %s44, 1
      %p125 = por %p123, %p124
      %p127 = scmp.ne.s32.totalorder %s112, %s126
      %p128 = scmp.eq.s32.totalorder %s44, 0
      %p129 = por %p127, %p128
      %s130 = ssub.s32 %s38, %s45
      %p131 = scmp.eq.s32.totalorder %s130, 0
      %s133 = sadd.s32 %s132, 1
      %s134 = scalar_select %p131, %s132, %s133
      %p137 = pneg %p131
      %p138 = scmp.eq.s32.totalorder %s38, 1
      %p139 = por %p137, %p138
      %p140 = scmp.ne.s32.totalorder %s132, %s135
      %p141 = scmp.eq.s32.totalorder %s38, 0
      %p142 = por %p140, %p141
      %p143 = scmp.ne.s32.totalorder %s132, %s135
      %p144 = scmp.eq.s32.totalorder %s43, 1
      %p145 = por %p143, %p144
      %p146 = scmp.ne.s32.totalorder %s135, %s136
      %p147 = scmp.eq.s32.totalorder %s43, 0
      %p148 = por %p146, %p147
      %p149 = scmp.ne.s32.totalorder %s135, %s136
      %p150 = scmp.eq.s32.totalorder %s44, 1
      %p151 = por %p149, %p150
      %p153 = scmp.ne.s32.totalorder %s136, %s152
      %p154 = scmp.eq.s32.totalorder %s44, 0
      %p155 = por %p153, %p154
      %s156 = ssub.s32 %s38, %s45
      %p157 = scmp.eq.s32.totalorder %s156, 0
      %s159 = sadd.s32 %s158, 1
      %s160 = scalar_select %p157, %s158, %s159
      %p163 = pneg %p157
      %p164 = scmp.eq.s32.totalorder %s38, 1
      %p165 = por %p163, %p164
      %p166 = scmp.ne.s32.totalorder %s158, %s161
      %p167 = scmp.eq.s32.totalorder %s38, 0
      %p168 = por %p166, %p167
      %p169 = scmp.ne.s32.totalorder %s158, %s161
      %p170 = scmp.eq.s32.totalorder %s43, 1
      %p171 = por %p169, %p170
      %p172 = scmp.ne.s32.totalorder %s161, %s162
      %p173 = scmp.eq.s32.totalorder %s43, 0
      %p174 = por %p172, %p173
      %p175 = scmp.ne.s32.totalorder %s161, %s162
      %p176 = scmp.eq.s32.totalorder %s44, 1
      %p177 = por %p175, %p176
      %p179 = scmp.ne.s32.totalorder %s162, %s178
      %p180 = scmp.eq.s32.totalorder %s44, 0
      %p181 = por %p179, %p180
      %s182 = ssub.s32 %s38, %s45
      %p183 = scmp.eq.s32.totalorder %s182, 0
      %s185 = sadd.s32 %s184, 1
      %s186 = scalar_select %p183, %s184, %s185
      %p189 = pneg %p183
      %p190 = scmp.eq.s32.totalorder %s38, 1
      %p191 = por %p189, %p190
      %p192 = scmp.ne.s32.totalorder %s184, %s187
      %p193 = scmp.eq.s32.totalorder %s38, 0
      %p194 = por %p192, %p193
      %p195 = scmp.ne.s32.totalorder %s184, %s187
      %p196 = scmp.eq.s32.totalorder %s43, 1
      %p197 = por %p195, %p196
      %p198 = scmp.ne.s32.totalorder %s187, %s188
      %p199 = scmp.eq.s32.totalorder %s43, 0
      %p200 = por %p198, %p199
      %p201 = scmp.ne.s32.totalorder %s187, %s188
      %p202 = scmp.eq.s32.totalorder %s44, 1
      %p203 = por %p201, %p202
      %p205 = scmp.ne.s32.totalorder %s188, %s204
      %p206 = scmp.eq.s32.totalorder %s44, 0
      %p207 = por %p205, %p206
      %s208 = ssub.s32 %s38, %s45
      %p209 = scmp.eq.s32.totalorder %s208, 0
      %s211 = sadd.s32 %s210, 1
      %s212 = scalar_select %p209, %s210, %s211
      %p215 = pneg %p209
      %p216 = scmp.eq.s32.totalorder %s38, 1
      %p217 = por %p215, %p216
      %p218 = scmp.ne.s32.totalorder %s210, %s213
      %p219 = scmp.eq.s32.totalorder %s38, 0
      %p220 = por %p218, %p219
      %p221 = scmp.ne.s32.totalorder %s210, %s213
      %p222 = scmp.eq.s32.totalorder %s43, 1
      %p223 = por %p221, %p222
      %p224 = scmp.ne.s32.totalorder %s213, %s214
      %p225 = scmp.eq.s32.totalorder %s43, 0
      %p226 = por %p224, %p225
      %p227 = scmp.ne.s32.totalorder %s213, %s214
      %p228 = scmp.eq.s32.totalorder %s44, 1
      %p229 = por %p227, %p228
      %p231 = scmp.ne.s32.totalorder %s214, %s230
      %p232 = scmp.eq.s32.totalorder %s44, 0
      %p233 = por %p231, %p232
      %s234 = ssub.s32 %s38, %s45
      %p235 = scmp.eq.s32.totalorder %s234, 0
      %s237 = sadd.s32 %s236, 1
      %s238 = scalar_select %p235, %s236, %s237
      %p241 = pneg %p235
      %p242 = scmp.eq.s32.totalorder %s38, 1
      %p243 = por %p241, %p242
      %p244 = scmp.ne.s32.totalorder %s236, %s239
      %p245 = scmp.eq.s32.totalorder %s38, 0
      %p246 = por %p244, %p245
      %p247 = scmp.ne.s32.totalorder %s236, %s239
      %p248 = scmp.eq.s32.totalorder %s43, 1
      %p249 = por %p247, %p248
      %p250 = scmp.ne.s32.totalorder %s239, %s240
      %p251 = scmp.eq.s32.totalorder %s43, 0
      %p252 = por %p250, %p251
      %p253 = scmp.ne.s32.totalorder %s239, %s240
      %p254 = scmp.eq.s32.totalorder %s44, 1
      %p255 = por %p253, %p254
      %p257 = scmp.ne.s32.totalorder %s240, %s256
      %p258 = scmp.eq.s32.totalorder %s44, 0
      %p259 = por %p257, %p258
      %s260 = ssub.s32 %s38, %s45
      %p261 = scmp.eq.s32.totalorder %s260, 0
      %s263 = sadd.s32 %s262, 1
      %s264 = scalar_select %p261, %s262, %s263
      %p267 = pneg %p261
      %p268 = scmp.eq.s32.totalorder %s38, 1
      %p269 = por %p267, %p268
      %p270 = scmp.ne.s32.totalorder %s262, %s265
      %p271 = scmp.eq.s32.totalorder %s38, 0
      %p272 = por %p270, %p271
      %p273 = scmp.ne.s32.totalorder %s262, %s265
      %p274 = scmp.eq.s32.totalorder %s43, 1
      %p275 = por %p273, %p274
      %p276 = scmp.ne.s32.totalorder %s265, %s266
      %p277 = scmp.eq.s32.totalorder %s43, 0
      %p278 = por %p276, %p277
      %p279 = scmp.ne.s32.totalorder %s265, %s266
      %p280 = scmp.eq.s32.totalorder %s44, 1
      %p281 = por %p279, %p280
      %p283 = scmp.ne.s32.totalorder %s266, %s282
      %p284 = scmp.eq.s32.totalorder %s44, 0
      %p285 = por %p283, %p284
      %s286 = ssub.s32 %s38, %s45
      %p287 = scmp.eq.s32.totalorder %s286, 0
      %s289 = sadd.s32 %s288, 1
      %s290 = scalar_select %p287, %s288, %s289
      %p293 = pneg %p287
      %p294 = scmp.eq.s32.totalorder %s38, 1
      %p295 = por %p293, %p294
      %p296 = scmp.ne.s32.totalorder %s288, %s291
      %p297 = scmp.eq.s32.totalorder %s38, 0
      %p298 = por %p296, %p297
      %p299 = scmp.ne.s32.totalorder %s288, %s291
      %p300 = scmp.eq.s32.totalorder %s43, 1
      %p301 = por %p299, %p300
      %p302 = scmp.ne.s32.totalorder %s291, %s292
      %p303 = scmp.eq.s32.totalorder %s43, 0
      %p304 = por %p302, %p303
      %p305 = scmp.ne.s32.totalorder %s291, %s292
      %p306 = scmp.eq.s32.totalorder %s44, 1
      %p307 = por %p305, %p306
      %p309 = scmp.ne.s32.totalorder %s292, %s308
      %p310 = scmp.eq.s32.totalorder %s44, 0
      %p311 = por %p309, %p310
      %s312 = ssub.s32 %s38, %s45
      %p313 = scmp.eq.s32.totalorder %s312, 0
      %s315 = sadd.s32 %s314, 1
      %s316 = scalar_select %p313, %s314, %s315
      %p319 = pneg %p313
      %p320 = scmp.eq.s32.totalorder %s38, 1
      %p321 = por %p319, %p320
      %p322 = scmp.ne.s32.totalorder %s314, %s317
      %p323 = scmp.eq.s32.totalorder %s38, 0
      %p324 = por %p322, %p323
      %p325 = scmp.ne.s32.totalorder %s314, %s317
      %p326 = scmp.eq.s32.totalorder %s43, 1
      %p327 = por %p325, %p326
      %p328 = scmp.ne.s32.totalorder %s317, %s318
      %p329 = scmp.eq.s32.totalorder %s43, 0
      %p330 = por %p328, %p329
      %p331 = scmp.ne.s32.totalorder %s317, %s318
      %p332 = scmp.eq.s32.totalorder %s44, 1
      %p333 = por %p331, %p332
      %p335 = scmp.ne.s32.totalorder %s318, %s334
      %p336 = scmp.eq.s32.totalorder %s44, 0
      %p337 = por %p335, %p336
      %s338 = ssub.s32 %s38, %s45
      %p339 = scmp.eq.s32.totalorder %s338, 0
      %s341 = sadd.s32 %s340, 1
      %s342 = scalar_select %p339, %s340, %s341
      %p345 = pneg %p339
      %p346 = scmp.eq.s32.totalorder %s38, 1
      %p347 = por %p345, %p346
      %p348 = scmp.ne.s32.totalorder %s340, %s343
      %p349 = scmp.eq.s32.totalorder %s38, 0
      %p350 = por %p348, %p349
      %p351 = scmp.ne.s32.totalorder %s340, %s343
      %p352 = scmp.eq.s32.totalorder %s43, 1
      %p353 = por %p351, %p352
      %p354 = scmp.ne.s32.totalorder %s343, %s344
      %p355 = scmp.eq.s32.totalorder %s43, 0
      %p356 = por %p354, %p355
      %p357 = scmp.ne.s32.totalorder %s343, %s344
      %p358 = scmp.eq.s32.totalorder %s44, 1
      %p359 = por %p357, %p358
      %p361 = scmp.ne.s32.totalorder %s344, %s360
      %p362 = scmp.eq.s32.totalorder %s44, 0
      %p363 = por %p361, %p362
      %s364 = ssub.s32 %s38, %s45
      %p365 = scmp.eq.s32.totalorder %s364, 0
      %s367 = sadd.s32 %s366, 1
      %s368 = scalar_select %p365, %s366, %s367
      %p371 = pneg %p365
      %p372 = scmp.eq.s32.totalorder %s38, 1
      %p373 = por %p371, %p372
      %p374 = scmp.ne.s32.totalorder %s366, %s369
      %p375 = scmp.eq.s32.totalorder %s38, 0
      %p376 = por %p374, %p375
      %p377 = scmp.ne.s32.totalorder %s366, %s369
      %p378 = scmp.eq.s32.totalorder %s43, 1
      %p379 = por %p377, %p378
      %p380 = scmp.ne.s32.totalorder %s369, %s370
      %p381 = scmp.eq.s32.totalorder %s43, 0
      %p382 = por %p380, %p381
      %p383 = scmp.ne.s32.totalorder %s369, %s370
      %p384 = scmp.eq.s32.totalorder %s44, 1
      %p385 = por %p383, %p384
      %p387 = scmp.ne.s32.totalorder %s370, %s386
      %p388 = scmp.eq.s32.totalorder %s44, 0
      %p389 = por %p387, %p388
      %s390 = ssub.s32 %s38, %s45
      %p391 = scmp.eq.s32.totalorder %s390, 0
      %s393 = sadd.s32 %s392, 1
      %s394 = scalar_select %p391, %s392, %s393
      %p397 = pneg %p391
      %p398 = scmp.eq.s32.totalorder %s38, 1
      %p399 = por %p397, %p398
      %p400 = scmp.ne.s32.totalorder %s392, %s395
      %p401 = scmp.eq.s32.totalorder %s38, 0
      %p402 = por %p400, %p401
      %p403 = scmp.ne.s32.totalorder %s392, %s395
      %p404 = scmp.eq.s32.totalorder %s43, 1
      %p405 = por %p403, %p404
      %p406 = scmp.ne.s32.totalorder %s395, %s396
      %p407 = scmp.eq.s32.totalorder %s43, 0
      %p408 = por %p406, %p407
      %p409 = scmp.ne.s32.totalorder %s395, %s396
      %p410 = scmp.eq.s32.totalorder %s44, 1
      %p411 = por %p409, %p410
      %p413 = scmp.ne.s32.totalorder %s396, %s412
      %p414 = scmp.eq.s32.totalorder %s44, 0
      %p415 = por %p413, %p414
      %s416 = ssub.s32 %s38, %s45
      %p417 = scmp.eq.s32.totalorder %s416, 0
      %s419 = sadd.s32 %s418, 1
      %s420 = scalar_select %p417, %s418, %s419
      %p423 = pneg %p417
      %p424 = scmp.eq.s32.totalorder %s38, 1
      %p425 = por %p423, %p424
      %p426 = scmp.ne.s32.totalorder %s418, %s421
      %p427 = scmp.eq.s32.totalorder %s38, 0
      %p428 = por %p426, %p427
      %p429 = scmp.ne.s32.totalorder %s418, %s421
      %p430 = scmp.eq.s32.totalorder %s43, 1
      %p431 = por %p429, %p430
      %p432 = scmp.ne.s32.totalorder %s421, %s422
      %p433 = scmp.eq.s32.totalorder %s43, 0
      %p434 = por %p432, %p433
      %p435 = scmp.ne.s32.totalorder %s421, %s422
      %p436 = scmp.eq.s32.totalorder %s44, 1
      %p437 = por %p435, %p436
      %p439 = scmp.ne.s32.totalorder %s422, %s438
      %p440 = scmp.eq.s32.totalorder %s44, 0
      %p441 = por %p439, %p440
      %s442 = ssub.s32 %s38, %s45
      %p443 = scmp.eq.s32.totalorder %s442, 0
      %s445 = sadd.s32 %s444, 1
      %s446 = scalar_select %p443, %s444, %s445
      %p449 = pneg %p443
      %p450 = scmp.eq.s32.totalorder %s38, 1
      %p451 = por %p449, %p450
      %p452 = scmp.ne.s32.totalorder %s444, %s447
      %p453 = scmp.eq.s32.totalorder %s38, 0
      %p454 = por %p452, %p453
      %p455 = scmp.ne.s32.totalorder %s444, %s447
      %p456 = scmp.eq.s32.totalorder %s43, 1
      %p457 = por %p455, %p456
      %p458 = scmp.ne.s32.totalorder %s447, %s448
      %p459 = scmp.eq.s32.totalorder %s43, 0
      %p460 = por %p458, %p459
      %p461 = scmp.ne.s32.totalorder %s447, %s448
      %p462 = scmp.eq.s32.totalorder %s44, 1
      %p463 = por %p461, %p462
      %p465 = scmp.ne.s32.totalorder %s448, %s464
      %p466 = scmp.eq.s32.totalorder %s44, 0
      %p467 = por %p465, %p466
      %s468 = ssub.s32 %s38, %s45
      %p469 = scmp.eq.s32.totalorder %s468, 0
      %s471 = sadd.s32 %s470, 1
      %s472 = scalar_select %p469, %s470, %s471
      %p475 = pneg %p469
      %p476 = scmp.eq.s32.totalorder %s38, 1
      %p477 = por %p475, %p476
      %p478 = scmp.ne.s32.totalorder %s470, %s473
      %p479 = scmp.eq.s32.totalorder %s38, 0
      %p480 = por %p478, %p479
      %p481 = scmp.ne.s32.totalorder %s470, %s473
      %p482 = scmp.eq.s32.totalorder %s43, 1
      %p483 = por %p481, %p482
      %p484 = scmp.ne.s32.totalorder %s473, %s474
      %p485 = scmp.eq.s32.totalorder %s43, 0
      %p486 = por %p484, %p485
      %p487 = scmp.ne.s32.totalorder %s473, %s474
      %p488 = scmp.eq.s32.totalorder %s44, 1
      %p489 = por %p487, %p488
      %p491 = scmp.ne.s32.totalorder %s474, %s490
      %p492 = scmp.eq.s32.totalorder %s44, 0
      %p493 = por %p491, %p492
      %s494 = ssub.s32 %s38, %s45
      %p495 = scmp.eq.s32.totalorder %s494, 0
      %s497 = sadd.s32 %s496, 1
      %s498 = scalar_select %p495, %s496, %s497
      %p501 = pneg %p495
      %p502 = scmp.eq.s32.totalorder %s38, 1
      %p503 = por %p501, %p502
      %p504 = scmp.ne.s32.totalorder %s496, %s499
      %p505 = scmp.eq.s32.totalorder %s38, 0
      %p506 = por %p504, %p505
      %p507 = scmp.ne.s32.totalorder %s496, %s499
      %p508 = scmp.eq.s32.totalorder %s43, 1
      %p509 = por %p507, %p508
      %p510 = scmp.ne.s32.totalorder %s499, %s500
      %p511 = scmp.eq.s32.totalorder %s43, 0
      %p512 = por %p510, %p511
      %p513 = scmp.ne.s32.totalorder %s499, %s500
      %p514 = scmp.eq.s32.totalorder %s44, 1
      %p515 = por %p513, %p514
      %p517 = scmp.ne.s32.totalorder %s500, %s516
      %p518 = scmp.eq.s32.totalorder %s44, 0
      %p519 = por %p517, %p518
      %s520 = ssub.s32 %s38, %s45
      %p521 = scmp.eq.s32.totalorder %s520, 0
      %s523 = sadd.s32 %s522, 1
      %s524 = scalar_select %p521, %s522, %s523
      %p527 = pneg %p521
      %p528 = scmp.eq.s32.totalorder %s38, 1
      %p529 = por %p527, %p528
      %p530 = scmp.ne.s32.totalorder %s522, %s525
      %p531 = scmp.eq.s32.totalorder %s38, 0
      %p532 = por %p530, %p531
      %p533 = scmp.ne.s32.totalorder %s522, %s525
      %p534 = scmp.eq.s32.totalorder %s43, 1
      %p535 = por %p533, %p534
      %p536 = scmp.ne.s32.totalorder %s525, %s526
      %p537 = scmp.eq.s32.totalorder %s43, 0
      %p538 = por %p536, %p537
      %p539 = scmp.ne.s32.totalorder %s525, %s526
      %p540 = scmp.eq.s32.totalorder %s44, 1
      %p541 = por %p539, %p540
      %p543 = scmp.ne.s32.totalorder %s526, %s542
      %p544 = scmp.eq.s32.totalorder %s44, 0
      %p545 = por %p543, %p544
      %p546 = scmp.le.s32.totalorder 1, %s38
      %p547 = scmp.lt.s32.totalorder %s38, 3
      %p548 = pnand %p546, %p547
      %p549 = pneg %p548
      // Predicated region
      $region9: #{general_decoder_forward.1} parent=5 // pred_check
        _
      $region10: #{general_decoder_forward.1} parent=5 // pred_check_branch
        %551 = sbr.rel (%p548) target = $region12
      $region11: #{general_decoder_forward.1} parent=5 // pred_region
        %s552 = ssub.s32 %s38, 1
        // Predicated region
        $region13: #{general_decoder_forward.1} parent=11 // pred_check
          %p553 = pneg %p59
        $region14: #{general_decoder_forward.1} parent=11 // pred_check_branch
          %555 = sbr.rel (%p553) target = $region16
        $region15: #{general_decoder_forward.1} parent=11 // pred_region
          %s557 = ssub.s32 128, 128
          %558 = vsyncadd [#allocation4], %s557
          %s560 = sshll.u32 [#allocation3], 4
          %s561 = int_to_ptr.vmem [resolvable:$true] %s560
          %563 = dma.hbm_to_vmem [thread:$0]  %s0, 128, %s561, [#allocation4]
        $region16: #{general_decoder_forward.1} parent=11 // pred_fallthru
          _
        // Predicated region
        $region17: #{general_decoder_forward.1} parent=11 // pred_check
          %p564 = pneg %p80
        $region18: #{general_decoder_forward.1} parent=11 // pred_check_branch
          %566 = sbr.rel (%p564) target = $region20
        $region19: #{general_decoder_forward.1} parent=11 // pred_region
          _
        $region20: #{general_decoder_forward.1} parent=11 // pred_fallthru
          _
        // Predicated region
        $region21: #{general_decoder_forward.1} parent=11 // pred_check
          %p567 = pneg %p101
        $region22: #{general_decoder_forward.1} parent=11 // pred_check_branch
          %569 = sbr.rel (%p567) target = $region24
        $region23: #{general_decoder_forward.1} parent=11 // pred_region
          _
        $region24: #{general_decoder_forward.1} parent=11 // pred_fallthru
          _
        // Predicated region
        $region25: #{general_decoder_forward.1} parent=11 // pred_check
          %p570 = pneg %p122
        $region26: #{general_decoder_forward.1} parent=11 // pred_check_branch
          %572 = sbr.rel (%p570) target = $region28
        $region27: #{general_decoder_forward.1} parent=11 // pred_region
          _
        $region28: #{general_decoder_forward.1} parent=11 // pred_fallthru
          _
      $region12: #{general_decoder_forward.1} parent=5 // pred_fallthru
        _
      %p573 = scmp.lt.s32.totalorder %s38, 2
      // Predicated region
      $region29: #{general_decoder_forward.1} parent=5 // pred_check
        %p574 = pneg %p573
      $region30: #{general_decoder_forward.1} parent=5 // pred_check_branch
        %576 = sbr.rel (%p574) target = $region32
      $region31: #{general_decoder_forward.1} parent=5 // pred_region
        // Predicated region
        $region33: #{general_decoder_forward.1} parent=31 // pred_check
          %p577 = pneg %p142
        $region34: #{general_decoder_forward.1} parent=31 // pred_check_branch
          %579 = sbr.rel (%p577) target = $region36
        $region35: #{general_decoder_forward.1} parent=31 // pred_region
          %p580 = scmp.lt.s32.totalorder %s38, 1
          %s581 = scalar_select %p580, %s38, 1
          %s582 = smul.addr %s581, 4
          %s583 = smul.addr %s582, 4
          %s584 = scalar_lea.vmem %s4, %s583
        $region36: #{general_decoder_forward.1} parent=31 // pred_fallthru
          _
        // Predicated region
        $region37: #{general_decoder_forward.1} parent=31 // pred_check
          %p585 = pneg %p168
        $region38: #{general_decoder_forward.1} parent=31 // pred_check_branch
          %587 = sbr.rel (%p585) target = $region40
        $region39: #{general_decoder_forward.1} parent=31 // pred_region
          %s588 = sand.u32 %s38, 1
          %s589 = scalar_lea.sflag [#allocation6], %s588
          %s590 = sand.u32 %s158, 1
          %s591 = scalar_lea.vmem [#allocation5], %s590
          %s593 = ssub.s32 16, 16
          %594 = vsyncadd %s589, %s593
          %s595 = smul.addr %s38, 16
          %s596 = scalar_lea.hbm %s5, %s595
          %s598 = sshll.u32 %s591, 4
          %s599 = int_to_ptr.vmem [resolvable:$true] %s598
          %601 = dma.hbm_to_vmem [thread:$0]  %s596, 16, %s599, %s589
        $region40: #{general_decoder_forward.1} parent=31 // pred_fallthru
          _
        // Predicated region
        $region41: #{general_decoder_forward.1} parent=31 // pred_check
          %p602 = pneg %p194
        $region42: #{general_decoder_forward.1} parent=31 // pred_check_branch
          %604 = sbr.rel (%p602) target = $region44
        $region43: #{general_decoder_forward.1} parent=31 // pred_region
          %p605 = scmp.lt.s32.totalorder %s38, 1
          %s606 = scalar_select %p605, %s38, 1
          %s607 = smul.addr %s606, 4
          %s608 = smul.addr %s607, 4
          %s609 = scalar_lea.vmem %s6, %s608
        $region44: #{general_decoder_forward.1} parent=31 // pred_fallthru
          _
        // Predicated region
        $region45: #{general_decoder_forward.1} parent=31 // pred_check
          %p610 = pneg %p220
        $region46: #{general_decoder_forward.1} parent=31 // pred_check_branch
          %612 = sbr.rel (%p610) target = $region48
        $region47: #{general_decoder_forward.1} parent=31 // pred_region
          %s613 = sand.u32 %s38, 1
          %s614 = scalar_lea.sflag [#allocation6], %s613
          %s615 = sand.u32 %s210, 1
          %s616 = scalar_lea.vmem [#allocation7], %s615
          %s618 = ssub.s32 16, 16
          %619 = vsyncadd %s614, %s618
          %s620 = smul.addr %s38, 16
          %s621 = scalar_lea.hbm %s7, %s620
          %s623 = sshll.u32 %s616, 4
          %s624 = int_to_ptr.vmem [resolvable:$true] %s623
          %626 = dma.hbm_to_vmem [thread:$0]  %s621, 16, %s624, %s614
        $region48: #{general_decoder_forward.1} parent=31 // pred_fallthru
          _
        // Predicated region
        $region49: #{general_decoder_forward.1} parent=31 // pred_check
          %p627 = pneg %p246
        $region50: #{general_decoder_forward.1} parent=31 // pred_check_branch
          %629 = sbr.rel (%p627) target = $region52
        $region51: #{general_decoder_forward.1} parent=31 // pred_region
          %p630 = scmp.lt.s32.totalorder %s38, 1
          %s631 = scalar_select %p630, %s38, 1
          %s632 = smul.addr %s631, 4
          %s633 = smul.addr %s632, 4
          %s634 = scalar_lea.vmem %s8, %s633
        $region52: #{general_decoder_forward.1} parent=31 // pred_fallthru
          _
        // Predicated region
        $region53: #{general_decoder_forward.1} parent=31 // pred_check
          %p635 = pneg %p272
        $region54: #{general_decoder_forward.1} parent=31 // pred_check_branch
          %637 = sbr.rel (%p635) target = $region56
        $region55: #{general_decoder_forward.1} parent=31 // pred_region
          %s638 = sand.u32 %s38, 1
          %s639 = scalar_lea.sflag [#allocation9], %s638
          %s640 = sand.u32 %s262, 1
          %s641 = scalar_lea.vmem [#allocation8], %s640
          %s643 = ssub.s32 16, 16
          %644 = vsyncadd %s639, %s643
          %s645 = smul.addr %s38, 16
          %s646 = scalar_lea.hbm %s9, %s645
          %s648 = sshll.u32 %s641, 4
          %s649 = int_to_ptr.vmem [resolvable:$true] %s648
          %651 = dma.hbm_to_vmem [thread:$0]  %s646, 16, %s649, %s639
        $region56: #{general_decoder_forward.1} parent=31 // pred_fallthru
          _
        // Predicated region
        $region57: #{general_decoder_forward.1} parent=31 // pred_check
          %p652 = pneg %p298
        $region58: #{general_decoder_forward.1} parent=31 // pred_check_branch
          %654 = sbr.rel (%p652) target = $region60
        $region59: #{general_decoder_forward.1} parent=31 // pred_region
          %p655 = scmp.lt.s32.totalorder %s38, 1
          %s656 = scalar_select %p655, %s38, 1
          %s657 = smul.addr %s656, 4
          %s658 = smul.addr %s657, 4
          %s659 = scalar_lea.vmem %s10, %s658
        $region60: #{general_decoder_forward.1} parent=31 // pred_fallthru
          _
        // Predicated region
        $region61: #{general_decoder_forward.1} parent=31 // pred_check
          %p660 = pneg %p324
        $region62: #{general_decoder_forward.1} parent=31 // pred_check_branch
          %662 = sbr.rel (%p660) target = $region64
        $region63: #{general_decoder_forward.1} parent=31 // pred_region
          %s663 = sand.u32 %s38, 1
          %s664 = scalar_lea.sflag [#allocation9], %s663
          %s665 = sand.u32 %s314, 1
          %s666 = scalar_lea.vmem [#allocation10], %s665
          %s668 = ssub.s32 16, 16
          %669 = vsyncadd %s664, %s668
          %s670 = smul.addr %s38, 16
          %s671 = scalar_lea.hbm %s11, %s670
          %s673 = sshll.u32 %s666, 4
          %s674 = int_to_ptr.vmem [resolvable:$true] %s673
          %676 = dma.hbm_to_vmem [thread:$0]  %s671, 16, %s674, %s664
        $region64: #{general_decoder_forward.1} parent=31 // pred_fallthru
          _
        // Predicated region
        $region65: #{general_decoder_forward.1} parent=31 // pred_check
          %p677 = pneg %p350
        $region66: #{general_decoder_forward.1} parent=31 // pred_check_branch
          %679 = sbr.rel (%p677) target = $region68
        $region67: #{general_decoder_forward.1} parent=31 // pred_region
          %p680 = scmp.lt.s32.totalorder %s38, 1
          %s681 = scalar_select %p680, %s38, 1
          %s682 = smul.addr %s681, 4
          %s683 = smul.addr %s682, 4
          %s684 = scalar_lea.vmem %s12, %s683
        $region68: #{general_decoder_forward.1} parent=31 // pred_fallthru
          _
        // Predicated region
        $region69: #{general_decoder_forward.1} parent=31 // pred_check
          %p685 = pneg %p376
        $region70: #{general_decoder_forward.1} parent=31 // pred_check_branch
          %687 = sbr.rel (%p685) target = $region72
        $region71: #{general_decoder_forward.1} parent=31 // pred_region
          %s688 = sand.u32 %s38, 1
          %s689 = scalar_lea.sflag [#allocation12], %s688
          %s690 = sand.u32 %s366, 1
          %s691 = scalar_lea.vmem [#allocation11], %s690
          %s693 = ssub.s32 16, 16
          %694 = vsyncadd %s689, %s693
          %s695 = smul.addr %s38, 16
          %s696 = scalar_lea.hbm %s13, %s695
          %s698 = sshll.u32 %s691, 4
          %s699 = int_to_ptr.vmem [resolvable:$true] %s698
          %701 = dma.hbm_to_vmem [thread:$0]  %s696, 16, %s699, %s689
        $region72: #{general_decoder_forward.1} parent=31 // pred_fallthru
          _
        // Predicated region
        $region73: #{general_decoder_forward.1} parent=31 // pred_check
          %p702 = pneg %p402
        $region74: #{general_decoder_forward.1} parent=31 // pred_check_branch
          %704 = sbr.rel (%p702) target = $region76
        $region75: #{general_decoder_forward.1} parent=31 // pred_region
          %p705 = scmp.lt.s32.totalorder %s38, 1
          %s706 = scalar_select %p705, %s38, 1
          %s707 = smul.addr %s706, 8
          %s708 = scalar_lea.vmem %s14, %s707
        $region76: #{general_decoder_forward.1} parent=31 // pred_fallthru
          _
        // Predicated region
        $region77: #{general_decoder_forward.1} parent=31 // pred_check
          %p709 = pneg %p428
        $region78: #{general_decoder_forward.1} parent=31 // pred_check_branch
          %711 = sbr.rel (%p709) target = $region80
        $region79: #{general_decoder_forward.1} parent=31 // pred_region
          %p712 = scmp.lt.s32.totalorder %s38, 1
          %s713 = scalar_select %p712, %s38, 1
          %s714 = smul.addr %s713, 4
          %s715 = smul.addr %s714, 4
          %s716 = scalar_lea.vmem %s15, %s715
        $region80: #{general_decoder_forward.1} parent=31 // pred_fallthru
          _
        // Predicated region
        $region81: #{general_decoder_forward.1} parent=31 // pred_check
          %p717 = pneg %p454
        $region82: #{general_decoder_forward.1} parent=31 // pred_check_branch
          %719 = sbr.rel (%p717) target = $region84
        $region83: #{general_decoder_forward.1} parent=31 // pred_region
          %s720 = sand.u32 %s38, 1
          %s721 = scalar_lea.sflag [#allocation12], %s720
          %s722 = sand.u32 %s444, 1
          %s723 = scalar_lea.vmem [#allocation13], %s722
          %s725 = ssub.s32 16, 16
          %726 = vsyncadd %s721, %s725
          %s727 = smul.addr %s38, 16
          %s728 = scalar_lea.hbm %s16, %s727
          %s730 = sshll.u32 %s723, 4
          %s731 = int_to_ptr.vmem [resolvable:$true] %s730
          %733 = dma.hbm_to_vmem [thread:$0]  %s728, 16, %s731, %s721
        $region84: #{general_decoder_forward.1} parent=31 // pred_fallthru
          _
        // Predicated region
        $region85: #{general_decoder_forward.1} parent=31 // pred_check
          %p734 = pneg %p480
        $region86: #{general_decoder_forward.1} parent=31 // pred_check_branch
          %736 = sbr.rel (%p734) target = $region88
        $region87: #{general_decoder_forward.1} parent=31 // pred_region
          %p737 = scmp.lt.s32.totalorder %s38, 1
          %s738 = scalar_select %p737, %s38, 1
          %s739 = smul.addr %s738, 8
          %s740 = smul.addr %s739, 4
          %s741 = scalar_lea.vmem %s17, %s740
        $region88: #{general_decoder_forward.1} parent=31 // pred_fallthru
          _
        // Predicated region
        $region89: #{general_decoder_forward.1} parent=31 // pred_check
          %p742 = pneg %p506
        $region90: #{general_decoder_forward.1} parent=31 // pred_check_branch
          %744 = sbr.rel (%p742) target = $region92
        $region91: #{general_decoder_forward.1} parent=31 // pred_region
          %s745 = sand.u32 %s496, 1
          %s746 = scalar_lea.sflag [#allocation15], %s745
          %s747 = sand.u32 %s496, 1
          %s748 = scalar_lea.vmem [#allocation14], %s747
          %s750 = ssub.s32 16, 16
          %751 = vsyncadd %s746, %s750
          %s752 = smul.addr %s38, 16
          %s753 = scalar_lea.hbm %s18, %s752
          %s755 = sshll.u32 %s748, 4
          %s756 = int_to_ptr.vmem [resolvable:$true] %s755
          %758 = dma.hbm_to_vmem [thread:$0]  %s753, 16, %s756, %s746
        $region92: #{general_decoder_forward.1} parent=31 // pred_fallthru
          _
      $region32: #{general_decoder_forward.1} parent=5 // pred_fallthru
        _
      %p759 = scmp.le.s32.totalorder 1, %s38
      %p760 = scmp.lt.s32.totalorder %s38, 3
      %p761 = pnand %p759, %p760
      %p762 = pneg %p761
      // Predicated region
      $region93: #{general_decoder_forward.1} parent=5 // pred_check
        _
      $region94: #{general_decoder_forward.1} parent=5 // pred_check_branch
        %764 = sbr.rel (%p761) target = $region96
      $region95: #{general_decoder_forward.1} parent=5 // pred_region
        %s765 = ssub.s32 %s38, 1
        // Predicated region
        $region97: #{general_decoder_forward.1} parent=95 // pred_check
          %p766 = pneg %p59
        $region98: #{general_decoder_forward.1} parent=95 // pred_check_branch
          %768 = sbr.rel (%p766) target = $region100
        $region99: #{general_decoder_forward.1} parent=95 // pred_region
          %769 = dma.done [#allocation4], 128
        $region100: #{general_decoder_forward.1} parent=95 // pred_fallthru
          _
        %s770 = sand.u32 %s43, 1
        %s771 = scalar_lea.sflag [#allocation6], %s770
        %s772 = sand.u32 %s161, 1
        %s773 = scalar_lea.vmem [#allocation5], %s772
        // Predicated region
        $region101: #{general_decoder_forward.1} parent=95 // pred_check
          %p774 = pneg %p174
        $region102: #{general_decoder_forward.1} parent=95 // pred_check_branch
          %776 = sbr.rel (%p774) target = $region104
        $region103: #{general_decoder_forward.1} parent=95 // pred_region
          %777 = dma.done %s771, 16
        $region104: #{general_decoder_forward.1} parent=95 // pred_fallthru
          _
        %s778 = sand.u32 %s43, 1
        %s779 = scalar_lea.sflag [#allocation6], %s778
        %s780 = sand.u32 %s213, 1
        %s781 = scalar_lea.vmem [#allocation7], %s780
        // Predicated region
        $region105: #{general_decoder_forward.1} parent=95 // pred_check
          %p782 = pneg %p226
        $region106: #{general_decoder_forward.1} parent=95 // pred_check_branch
          %784 = sbr.rel (%p782) target = $region108
        $region107: #{general_decoder_forward.1} parent=95 // pred_region
          %785 = dma.done %s779, 16
        $region108: #{general_decoder_forward.1} parent=95 // pred_fallthru
          _
        %s786 = sand.u32 %s43, 1
        %s787 = scalar_lea.sflag [#allocation9], %s786
        %s788 = sand.u32 %s265, 1
        %s789 = scalar_lea.vmem [#allocation8], %s788
        // Predicated region
        $region109: #{general_decoder_forward.1} parent=95 // pred_check
          %p790 = pneg %p278
        $region110: #{general_decoder_forward.1} parent=95 // pred_check_branch
          %792 = sbr.rel (%p790) target = $region112
        $region111: #{general_decoder_forward.1} parent=95 // pred_region
          %793 = dma.done %s787, 16
        $region112: #{general_decoder_forward.1} parent=95 // pred_fallthru
          _
        %s794 = sand.u32 %s43, 1
        %s795 = scalar_lea.sflag [#allocation9], %s794
        %s796 = sand.u32 %s317, 1
        %s797 = scalar_lea.vmem [#allocation10], %s796
        // Predicated region
        $region113: #{general_decoder_forward.1} parent=95 // pred_check
          %p798 = pneg %p330
        $region114: #{general_decoder_forward.1} parent=95 // pred_check_branch
          %800 = sbr.rel (%p798) target = $region116
        $region115: #{general_decoder_forward.1} parent=95 // pred_region
          %801 = dma.done %s795, 16
        $region116: #{general_decoder_forward.1} parent=95 // pred_fallthru
          _
        %s802 = sand.u32 %s43, 1
        %s803 = scalar_lea.sflag [#allocation12], %s802
        %s804 = sand.u32 %s369, 1
        %s805 = scalar_lea.vmem [#allocation11], %s804
        // Predicated region
        $region117: #{general_decoder_forward.1} parent=95 // pred_check
          %p806 = pneg %p382
        $region118: #{general_decoder_forward.1} parent=95 // pred_check_branch
          %808 = sbr.rel (%p806) target = $region120
        $region119: #{general_decoder_forward.1} parent=95 // pred_region
          %809 = dma.done %s803, 16
        $region120: #{general_decoder_forward.1} parent=95 // pred_fallthru
          _
        %s810 = sand.u32 %s43, 1
        %s811 = scalar_lea.sflag [#allocation12], %s810
        %s812 = sand.u32 %s447, 1
        %s813 = scalar_lea.vmem [#allocation13], %s812
        // Predicated region
        $region121: #{general_decoder_forward.1} parent=95 // pred_check
          %p814 = pneg %p460
        $region122: #{general_decoder_forward.1} parent=95 // pred_check_branch
          %816 = sbr.rel (%p814) target = $region124
        $region123: #{general_decoder_forward.1} parent=95 // pred_region
          %817 = dma.done %s811, 16
        $region124: #{general_decoder_forward.1} parent=95 // pred_fallthru
          _
        %s818 = sand.u32 %s499, 1
        %s819 = scalar_lea.sflag [#allocation15], %s818
        %s820 = sand.u32 %s499, 1
        %s821 = scalar_lea.vmem [#allocation14], %s820
        // Predicated region
        $region125: #{general_decoder_forward.1} parent=95 // pred_check
          %p822 = pneg %p512
        $region126: #{general_decoder_forward.1} parent=95 // pred_check_branch
          %824 = sbr.rel (%p822) target = $region128
        $region127: #{general_decoder_forward.1} parent=95 // pred_region
          %825 = dma.done %s819, 16
        $region128: #{general_decoder_forward.1} parent=95 // pred_fallthru
          _
        %p826 = pneg %p59
        %p827 = pneg %p56
        %p828 = pneg %p80
        %p829 = pneg %p77
        %p830 = pneg %p101
        %p831 = pneg %p98
        %p832 = pneg %p122
        %p833 = pneg %p119
        %p834 = scmp.lt.s32.totalorder %s43, 1
        %s835 = scalar_select %p834, %s43, 1
        %s836 = smul.addr %s835, 4
        %s837 = smul.addr %s836, 4
        %s838 = scalar_lea.vmem %s4, %s837
        %p839 = pneg %p148
        %p840 = pneg %p145
        %s841 = sand.u32 %s43, 1
        %s842 = scalar_lea.sflag [#allocation6], %s841
        %s843 = sand.u32 %s161, 1
        %s844 = scalar_lea.vmem [#allocation5], %s843
        %p845 = pneg %p174
        %p846 = pneg %p171
        %p847 = scmp.lt.s32.totalorder %s43, 1
        %s848 = scalar_select %p847, %s43, 1
        %s849 = smul.addr %s848, 4
        %s850 = smul.addr %s849, 4
        %s851 = scalar_lea.vmem %s6, %s850
        %p852 = pneg %p200
        %p853 = pneg %p197
        %s854 = sand.u32 %s43, 1
        %s855 = scalar_lea.sflag [#allocation6], %s854
        %s856 = sand.u32 %s213, 1
        %s857 = scalar_lea.vmem [#allocation7], %s856
        %p858 = pneg %p226
        %p859 = pneg %p223
        %p860 = scmp.lt.s32.totalorder %s43, 1
        %s861 = scalar_select %p860, %s43, 1
        %s862 = smul.addr %s861, 4
        %s863 = smul.addr %s862, 4
        %s864 = scalar_lea.vmem %s8, %s863
        %p865 = pneg %p252
        %p866 = pneg %p249
        %s867 = sand.u32 %s43, 1
        %s868 = scalar_lea.sflag [#allocation9], %s867
        %s869 = sand.u32 %s265, 1
        %s870 = scalar_lea.vmem [#allocation8], %s869
        %p871 = pneg %p278
        %p872 = pneg %p275
        %p873 = scmp.lt.s32.totalorder %s43, 1
        %s874 = scalar_select %p873, %s43, 1
        %s875 = smul.addr %s874, 4
        %s876 = smul.addr %s875, 4
        %s877 = scalar_lea.vmem %s10, %s876
        %p878 = pneg %p304
        %p879 = pneg %p301
        %s880 = sand.u32 %s43, 1
        %s881 = scalar_lea.sflag [#allocation9], %s880
        %s882 = sand.u32 %s317, 1
        %s883 = scalar_lea.vmem [#allocation10], %s882
        %p884 = pneg %p330
        %p885 = pneg %p327
        %p886 = scmp.lt.s32.totalorder %s43, 1
        %s887 = scalar_select %p886, %s43, 1
        %s888 = smul.addr %s887, 4
        %s889 = smul.addr %s888, 4
        %s890 = scalar_lea.vmem %s12, %s889
        %p891 = pneg %p356
        %p892 = pneg %p353
        %s893 = sand.u32 %s43, 1
        %s894 = scalar_lea.sflag [#allocation12], %s893
        %s895 = sand.u32 %s369, 1
        %s896 = scalar_lea.vmem [#allocation11], %s895
        %p897 = pneg %p382
        %p898 = pneg %p379
        %p899 = scmp.lt.s32.totalorder %s43, 1
        %s900 = scalar_select %p899, %s43, 1
        %s901 = smul.addr %s900, 8
        %s902 = scalar_lea.vmem %s14, %s901
        %p903 = pneg %p408
        %p904 = pneg %p405
        %p905 = scmp.lt.s32.totalorder %s43, 1
        %s906 = scalar_select %p905, %s43, 1
        %s907 = smul.addr %s906, 4
        %s908 = smul.addr %s907, 4
        %s909 = scalar_lea.vmem %s15, %s908
        %p910 = pneg %p434
        %p911 = pneg %p431
        %s912 = sand.u32 %s43, 1
        %s913 = scalar_lea.sflag [#allocation12], %s912
        %s914 = sand.u32 %s447, 1
        %s915 = scalar_lea.vmem [#allocation13], %s914
        %p916 = pneg %p460
        %p917 = pneg %p457
        %p918 = scmp.lt.s32.totalorder %s43, 1
        %s919 = scalar_select %p918, %s43, 1
        %s920 = smul.addr %s919, 8
        %s921 = smul.addr %s920, 4
        %s922 = scalar_lea.vmem %s17, %s921
        %p923 = pneg %p486
        %p924 = pneg %p483
        %s925 = sand.u32 %s499, 1
        %s926 = scalar_lea.sflag [#allocation15], %s925
        %s927 = sand.u32 %s499, 1
        %s928 = scalar_lea.vmem [#allocation14], %s927
        %p929 = pneg %p512
        %p930 = pneg %p509
        %p931 = pneg %p538
        %p932 = pneg %p535
        %p933 = scmp.lt.s32.totalorder %s43, 1
        %s934 = scalar_select %p933, %s43, 1
        %s935 = smul.addr %s934, 8
        %s936 = scalar_lea.vmem %s19, %s935
        %p937 = scmp.lt.s32.totalorder %s43, 1
        %s938 = scalar_select %p937, %s43, 1
        %s939 = smul.addr %s938, 4
        %s940 = smul.addr %s939, 4
        %s941 = scalar_lea.vmem %s4, %s940
        %p942 = scmp.lt.s32.totalorder %s43, 1
        %s943 = scalar_select %p942, %s43, 1
        %s944 = smul.addr %s943, 4
        %s945 = smul.addr %s944, 4
        %s946 = scalar_lea.vmem %s6, %s945
        %p947 = scmp.lt.s32.totalorder %s43, 1
        %s948 = scalar_select %p947, %s43, 1
        %s949 = smul.addr %s948, 4
        %s950 = smul.addr %s949, 4
        %s951 = scalar_lea.vmem %s8, %s950
        %p952 = scmp.lt.s32.totalorder %s43, 1
        %s953 = scalar_select %p952, %s43, 1
        %s954 = smul.addr %s953, 4
        %s955 = smul.addr %s954, 4
        %s956 = scalar_lea.vmem %s10, %s955
        %p957 = scmp.lt.s32.totalorder %s43, 1
        %s958 = scalar_select %p957, %s43, 1
        %s959 = smul.addr %s958, 4
        %s960 = smul.addr %s959, 4
        %s961 = scalar_lea.vmem %s12, %s960
        %p962 = scmp.lt.s32.totalorder %s43, 1
        %s963 = scalar_select %p962, %s43, 1
        %s964 = smul.addr %s963, 8
        %s965 = scalar_lea.vmem %s14, %s964
        %p966 = scmp.lt.s32.totalorder %s43, 1
        %s967 = scalar_select %p966, %s43, 1
        %s968 = smul.addr %s967, 4
        %s969 = smul.addr %s968, 4
        %s970 = scalar_lea.vmem %s15, %s969
        %p971 = scmp.lt.s32.totalorder %s43, 1
        %s972 = scalar_select %p971, %s43, 1
        %s973 = smul.addr %s972, 8
        %s974 = smul.addr %s973, 4
        %s975 = scalar_lea.vmem %s17, %s974
        %p976 = scmp.lt.s32.totalorder %s43, 1
        %s977 = scalar_select %p976, %s43, 1
        %s978 = smul.addr %s977, 8
        %s979 = scalar_lea.vmem %s19, %s978
        %p981 = scmp.eq.s32.totalorder %s43, 0
        // Predicated region
        $region129: #{general_decoder_forward.1} parent=95 // pred_check
          %p982 = pneg %p981
        $region130: #{general_decoder_forward.1} parent=95 // pred_check_branch
          %984 = sbr.rel (%p982) target = $region132
        $region131: #{general_decoder_forward.1} parent=95 // pred_region
          %v985 = vld [vmem:[#allocation3] sm:$0xff]
          %vm986 = vcmask 261120
          %987 = vst.msk [vmem:[#allocation2] sm:$0xff] %vm986, %v985
        $region132: #{general_decoder_forward.1} parent=95 // pred_fallthru
          _
        %v988 = vld [vmem:[#allocation2] sm:$0xff]
        %v989 = vld [vmem:[%s1] sm:$0xff]
        %v990 = vld [vmem:[%s1 + $0x8] sm:$0xff]
        %v991 = vld [vmem:[%s1 + $0x10] sm:$0xff]
        %v992 = vld [vmem:[%s941] sm:$0xf]
        %v993 = vld [vmem:[%s941 + $0x4] sm:$0xf]
        %v994 = vld [vmem:[%s941 + $0x8] sm:$0xf]
        %v995 = vld [vmem:[%s941 + $0xc] sm:$0xf]
        %v996 = vpack.c.bf16 %v988, %v988
        %v997 = vld [vmem:[%s773] sm:$0x1]
        %v999 = vlaneseq
        %v1000 = vshrl.u32 %v999, 7
        %v1001 = vsub.s32 0, %v1000
        %v1002 = vrot.slane %v997, %v1001
        %v1008 = vunpack.c.l.b16 %v992
        %v1009 = vunpack.c.l.b16 %v993
        %v1010 = vunpack.c.l.b16 %v994
        %v1011 = vunpack.c.l.b16 %v995
        %v1012 = vpack.c.b16 %v1009, %v1008
        %v1013 = vpack.c.b16 %v1011, %v1010
        %vm1016 = vcmask 261120
        %v1018 = vsel %vm1016, %v996, 0
        %1020 = vmatprep.subr.bf16.mxu0 0
        %1021 = vmatpush1.bf16.msra.mxu0 0
        %1022 = vmatprep.subr.bf16.mxu0 0
        %1023 = vmatpush1.bf16.msra.mxu0 0
        %1024 = vmatprep.subr.bf16.mxu0 0
        %1025 = vmatpush1.bf16.msra.mxu0 0
        %1026 = vmatprep.subr.bf16.mxu0 0
        %1027 = vmatpush1.bf16.msra.mxu0 0
        %1028 = vmatprep.subr.bf16.mxu0 0
        %1029 = vmatpush1.bf16.msra.mxu0 0
        %1030 = vmatprep.subr.bf16.mxu0 0
        %1031 = vmatpush1.bf16.msra.mxu0 0
        %1032 = vmatprep.subr.bf16.mxu0 0
        %1033 = vmatpush1.bf16.msra.mxu0 %v1013
        %1034 = vmatprep.subr.bf16.mxu0 0
        %1035 = vmatpush1.bf16.msra.mxu0 %v1012
        %1036 = vmatprep.subr.bf16.mxu0 0
        %1037 = vmatpush2.bf16.msra.mxu0 0
        %1038 = vmatprep.subr.bf16.mxu0 0
        %1039 = vmatpush2.bf16.msra.mxu0 0
        %1040 = vmatprep.subr.bf16.mxu0 0
        %1041 = vmatpush2.bf16.msra.mxu0 0
        %1042 = vmatprep.subr.bf16.mxu0 0
        %1043 = vmatpush2.bf16.msra.mxu0 0
        %1044 = vmatprep.subr.bf16.mxu0 0
        %1045 = vmatpush2.bf16.msra.mxu0 0
        %1046 = vmatprep.subr.bf16.mxu0 0
        %1047 = vmatpush2.bf16.msra.mxu0 0
        %1048 = vmatprep.subr.bf16.mxu0 0
        %1049 = vmatpush2.bf16.msra.mxu0 0
        %1050 = vmatprep.subr.bf16.mxu0 0
        %1051 = vmatpush2.bf16.msra.mxu0 0
        %1052 = vmatprep.mubr.bf16.mxu0 0
        %1053 = vmatmul.mubr.bf16.gmra.mxu0 %v1018
        %v1054 = vpop.f32.mrf.mxu0
        %v1055 = vadd.f32 %v1002, %v1054
        %v1056 = vpop.f32.mrf.mxu0
        %v1057 = vpop.f32.mrf.mxu0
        %v1058 = vpop.f32.mrf.mxu0
        %1059 = vdwg.mxu0
        %v1060 = vpack.c.bf16 %v1055, %v1055
        %1062 = vrot.lane.b32.xlu0 %v1060, 96
        %v1063 = vpop.permute.xlu0 %1062
        %v1065 = vsel %vm1016, %v1060, 0
        %v1068 = vsel %vm1016, %v1063, 0
        %1070 = vmatprep.subr.bf16.mxu0 0
        %1071 = vmatpush1.bf16.xpose.msra.mxu0 0
        %1072 = vmatprep.subr.bf16.mxu0 0
        %1073 = vmatpush1.bf16.xpose.msra.mxu0 0
        %1074 = vmatprep.subr.bf16.mxu0 0
        %1075 = vmatpush1.bf16.xpose.msra.mxu0 0
        %1076 = vmatprep.subr.bf16.mxu0 0
        %1077 = vmatpush1.bf16.xpose.msra.mxu0 0
        %1078 = vmatprep.subr.bf16.mxu0 0
        %1079 = vmatpush1.bf16.xpose.msra.mxu0 0
        %1080 = vmatprep.subr.bf16.mxu0 0
        %1081 = vmatpush1.bf16.xpose.msra.mxu0 0
        %1082 = vmatprep.subr.bf16.mxu0 0
        %1083 = vmatpush1.bf16.xpose.msra.mxu0 0
        %1084 = vmatprep.subr.bf16.mxu0 0
        %1085 = vmatpush1.bf16.xpose.msra.mxu0 %v1068
        %1086 = vmatprep.subr.bf16.mxu0 0
        %1087 = vmatpush2.bf16.xpose.msra.mxu0 0
        %1088 = vmatprep.subr.bf16.mxu0 0
        %1089 = vmatpush2.bf16.xpose.msra.mxu0 0
        %1090 = vmatprep.subr.bf16.mxu0 0
        %1091 = vmatpush2.bf16.xpose.msra.mxu0 0
        %1092 = vmatprep.subr.bf16.mxu0 0
        %1093 = vmatpush2.bf16.xpose.msra.mxu0 0
        %1094 = vmatprep.subr.bf16.mxu0 0
        %1095 = vmatpush2.bf16.xpose.msra.mxu0 0
        %1096 = vmatprep.subr.bf16.mxu0 0
        %1097 = vmatpush2.bf16.xpose.msra.mxu0 0
        %1098 = vmatprep.subr.bf16.mxu0 0
        %1099 = vmatpush2.bf16.xpose.msra.mxu0 0
        %1100 = vmatprep.subr.bf16.mxu0 0
        %1101 = vmatpush2.bf16.xpose.msra.mxu0 0
        %1102 = vmatprep.mubr.bf16.mxu0 0
        %1103 = vmatmul.mubr.bf16.gmra.mxu0 %v1065
        %v1104 = vpop.f32.mrf.mxu0
        %v1105 = vadd.f32 0.0, %v1104
        %v1106 = vpop.f32.mrf.mxu0
        %v1107 = vpop.f32.mrf.mxu0
        %v1108 = vpop.f32.mrf.mxu0
        %1109 = vdwg.mxu0
        %v1110 = vmul.f32 %v1105, 0.17677669
        %v1111 = vld [vmem:[%s2] sm:$0xff]
        %v1112 = vadd.f32 %v1110, %v1111
        %vm1113 = vcmask 64512
        %v1114 = vsel %vm1113, %v1112, -inf
        %1115 = vmax.xlane.f32.xlu0 %v1114
        %v1116 = vpop.xlane.xlu0 %1115
        %v1117 = vsub.f32 %v1112, %v1116
        %v1118 = vmul.f32 %v1117, 1.442695
        %v1119 = vpow.pop %v1118
        %v1120 = vsel %vm1113, %v1119, 0.0
        %1121 = vadd.xlane.f32.xlu0 %v1120
        %v1122 = vpop.xlane.xlu0 %1121
        %v1123 = vrcp.pop %v1122
        %v1124 = vmul.f32 %v1119, %v1123
        %v1125 = vpack.c.bf16 %v1124, %v1124
        %1126 = vrot.lane.b32.xlu0 %v1060, 64
        %v1127 = vpop.permute.xlu0 %1126
        %v1129 = vsel %vm1113, %v1125, 0
        %vm1131 = vcmask 1043456
        %v1133 = vsel %vm1131, %v1127, 0
        %1135 = vmatprep.subr.bf16.mxu0 0
        %1136 = vmatpush1.bf16.msra.mxu0 0
        %1137 = vmatprep.subr.bf16.mxu0 0
        %1138 = vmatpush1.bf16.msra.mxu0 0
        %1139 = vmatprep.subr.bf16.mxu0 0
        %1140 = vmatpush1.bf16.msra.mxu0 0
        %1141 = vmatprep.subr.bf16.mxu0 0
        %1142 = vmatpush1.bf16.msra.mxu0 0
        %1143 = vmatprep.subr.bf16.mxu0 0
        %1144 = vmatpush1.bf16.msra.mxu0 0
        %1145 = vmatprep.subr.bf16.mxu0 0
        %1146 = vmatpush1.bf16.msra.mxu0 0
        %1147 = vmatprep.subr.bf16.mxu0 0
        %1148 = vmatpush1.bf16.msra.mxu0 0
        %1149 = vmatprep.subr.bf16.mxu0 0
        %1150 = vmatpush1.bf16.msra.mxu0 %v1133
        %1151 = vmatprep.subr.bf16.mxu0 0
        %1152 = vmatpush2.bf16.msra.mxu0 0
        %1153 = vmatprep.subr.bf16.mxu0 0
        %1154 = vmatpush2.bf16.msra.mxu0 0
        %1155 = vmatprep.subr.bf16.mxu0 0
        %1156 = vmatpush2.bf16.msra.mxu0 0
        %1157 = vmatprep.subr.bf16.mxu0 0
        %1158 = vmatpush2.bf16.msra.mxu0 0
        %1159 = vmatprep.subr.bf16.mxu0 0
        %1160 = vmatpush2.bf16.msra.mxu0 0
        %1161 = vmatprep.subr.bf16.mxu0 0
        %1162 = vmatpush2.bf16.msra.mxu0 0
        %1163 = vmatprep.subr.bf16.mxu0 0
        %1164 = vmatpush2.bf16.msra.mxu0 0
        %1165 = vmatprep.subr.bf16.mxu0 0
        %1166 = vmatpush2.bf16.msra.mxu0 0
        %1167 = vmatprep.mubr.bf16.mxu0 0
        %1168 = vmatmul.mubr.bf16.gmra.mxu0 %v1129
        %v1169 = vpop.f32.mrf.mxu0
        %v1170 = vadd.f32 0.0, %v1169
        %v1171 = vpop.f32.mrf.mxu0
        %v1172 = vpop.f32.mrf.mxu0
        %v1173 = vpop.f32.mrf.mxu0
        %1174 = vdwg.mxu0
        %v1175 = vld [vmem:[%s946] sm:$0xf]
        %v1176 = vld [vmem:[%s946 + $0x4] sm:$0xf]
        %v1177 = vld [vmem:[%s946 + $0x8] sm:$0xf]
        %v1178 = vld [vmem:[%s946 + $0xc] sm:$0xf]
        %v1179 = vpack.c.bf16 %v1170, %v1170
        %v1180 = vld [vmem:[%s781] sm:$0x1]
        %v1182 = vlaneseq
        %v1183 = vshrl.u32 %v1182, 7
        %v1184 = vsub.s32 0, %v1183
        %v1185 = vrot.slane %v1180, %v1184
        %v1191 = vunpack.c.l.b16 %v1175
        %v1192 = vunpack.c.l.b16 %v1176
        %v1193 = vunpack.c.l.b16 %v1177
        %v1194 = vunpack.c.l.b16 %v1178
        %v1195 = vpack.c.b16 %v1192, %v1191
        %v1196 = vpack.c.b16 %v1194, %v1193
        %v1200 = vsel %vm1016, %v1179, 0
        %1202 = vmatprep.subr.bf16.mxu0 0
        %1203 = vmatpush1.bf16.msra.mxu0 0
        %1204 = vmatprep.subr.bf16.mxu0 0
        %1205 = vmatpush1.bf16.msra.mxu0 0
        %1206 = vmatprep.subr.bf16.mxu0 0
        %1207 = vmatpush1.bf16.msra.mxu0 0
        %1208 = vmatprep.subr.bf16.mxu0 0
        %1209 = vmatpush1.bf16.msra.mxu0 0
        %1210 = vmatprep.subr.bf16.mxu0 0
        %1211 = vmatpush1.bf16.msra.mxu0 0
        %1212 = vmatprep.subr.bf16.mxu0 0
        %1213 = vmatpush1.bf16.msra.mxu0 0
        %1214 = vmatprep.subr.bf16.mxu0 0
        %1215 = vmatpush1.bf16.msra.mxu0 %v1196
        %1216 = vmatprep.subr.bf16.mxu0 0
        %1217 = vmatpush1.bf16.msra.mxu0 %v1195
        %1218 = vmatprep.subr.bf16.mxu0 0
        %1219 = vmatpush2.bf16.msra.mxu0 0
        %1220 = vmatprep.subr.bf16.mxu0 0
        %1221 = vmatpush2.bf16.msra.mxu0 0
        %1222 = vmatprep.subr.bf16.mxu0 0
        %1223 = vmatpush2.bf16.msra.mxu0 0
        %1224 = vmatprep.subr.bf16.mxu0 0
        %1225 = vmatpush2.bf16.msra.mxu0 0
        %1226 = vmatprep.subr.bf16.mxu0 0
        %1227 = vmatpush2.bf16.msra.mxu0 0
        %1228 = vmatprep.subr.bf16.mxu0 0
        %1229 = vmatpush2.bf16.msra.mxu0 0
        %1230 = vmatprep.subr.bf16.mxu0 0
        %1231 = vmatpush2.bf16.msra.mxu0 0
        %1232 = vmatprep.subr.bf16.mxu0 0
        %1233 = vmatpush2.bf16.msra.mxu0 0
        %1234 = vmatprep.mubr.bf16.mxu0 0
        %1235 = vmatmul.mubr.bf16.gmra.mxu0 %v1200
        %v1236 = vpop.f32.mrf.mxu0
        %v1237 = vadd.f32 %v1185, %v1236
        %v1238 = vpop.f32.mrf.mxu0
        %v1239 = vpop.f32.mrf.mxu0
        %v1240 = vpop.f32.mrf.mxu0
        %1241 = vdwg.mxu0
        %v1242 = vadd.f32 %v988, %v1237
        %v1243 = vld [vmem:[%s965] sm:$0x1]
        %v1244 = vld [vmem:[%s965 + $0x1] sm:$0x1]
        %v1245 = vsel %vm1016, %v1242, 0.0
        %1246 = vadd.xlane.f32.xlu0 %v1245
        %v1247 = vpop.xlane.xlu0 %1246
        %v1248 = vrcp.pop 32.0
        %v1249 = vmul.f32 %v1247, %v1248
        %v1250 = vsub.f32 %v1242, %v1249
        %v1251 = vmul.f32 %v1250, %v1250
        %v1252 = vsel %vm1016, %v1251, 0.0
        %1253 = vadd.xlane.f32.xlu0 %v1252
        %v1254 = vpop.xlane.xlu0 %1253
        %v1255 = vmul.f32 %v1254, %v1248
        %v1256 = vadd.f32 %v1255, 1e-05
        %v1257 = vrsqrt.pop %v1256
        %v1258 = vmul.f32 %v1250, %v1257
        %v1259 = vlaneseq
        %v1260 = vshrl.u32 %v1259, 7
        %v1261 = vsub.s32 0, %v1260
        %v1262 = vrot.slane %v1243, %v1261
        %v1263 = vmul.f32 %v1258, %v1262
        %v1264 = vlaneseq
        %v1265 = vshrl.u32 %v1264, 7
        %v1266 = vsub.s32 0, %v1265
        %v1267 = vrot.slane %v1244, %v1266
        %v1268 = vadd.f32 %v1263, %v1267
        %v1269 = vld [vmem:[%s951] sm:$0xf]
        %v1270 = vld [vmem:[%s951 + $0x4] sm:$0xf]
        %v1271 = vld [vmem:[%s951 + $0x8] sm:$0xf]
        %v1272 = vld [vmem:[%s951 + $0xc] sm:$0xf]
        %v1273 = vpack.c.bf16 %v1268, %v1268
        %v1274 = vld [vmem:[%s789] sm:$0x1]
        %v1276 = vlaneseq
        %v1277 = vshrl.u32 %v1276, 7
        %v1278 = vsub.s32 0, %v1277
        %v1279 = vrot.slane %v1274, %v1278
        %v1285 = vunpack.c.l.b16 %v1269
        %v1286 = vunpack.c.l.b16 %v1270
        %v1287 = vunpack.c.l.b16 %v1271
        %v1288 = vunpack.c.l.b16 %v1272
        %v1289 = vpack.c.b16 %v1286, %v1285
        %v1290 = vpack.c.b16 %v1288, %v1287
        %v1294 = vsel %vm1016, %v1273, 0
        %1296 = vmatprep.subr.bf16.mxu0 0
        %1297 = vmatpush1.bf16.msra.mxu0 0
        %1298 = vmatprep.subr.bf16.mxu0 0
        %1299 = vmatpush1.bf16.msra.mxu0 0
        %1300 = vmatprep.subr.bf16.mxu0 0
        %1301 = vmatpush1.bf16.msra.mxu0 0
        %1302 = vmatprep.subr.bf16.mxu0 0
        %1303 = vmatpush1.bf16.msra.mxu0 0
        %1304 = vmatprep.subr.bf16.mxu0 0
        %1305 = vmatpush1.bf16.msra.mxu0 0
        %1306 = vmatprep.subr.bf16.mxu0 0
        %1307 = vmatpush1.bf16.msra.mxu0 0
        %1308 = vmatprep.subr.bf16.mxu0 0
        %1309 = vmatpush1.bf16.msra.mxu0 %v1290
        %1310 = vmatprep.subr.bf16.mxu0 0
        %1311 = vmatpush1.bf16.msra.mxu0 %v1289
        %1312 = vmatprep.subr.bf16.mxu0 0
        %1313 = vmatpush2.bf16.msra.mxu0 0
        %1314 = vmatprep.subr.bf16.mxu0 0
        %1315 = vmatpush2.bf16.msra.mxu0 0
        %1316 = vmatprep.subr.bf16.mxu0 0
        %1317 = vmatpush2.bf16.msra.mxu0 0
        %1318 = vmatprep.subr.bf16.mxu0 0
        %1319 = vmatpush2.bf16.msra.mxu0 0
        %1320 = vmatprep.subr.bf16.mxu0 0
        %1321 = vmatpush2.bf16.msra.mxu0 0
        %1322 = vmatprep.subr.bf16.mxu0 0
        %1323 = vmatpush2.bf16.msra.mxu0 0
        %1324 = vmatprep.subr.bf16.mxu0 0
        %1325 = vmatpush2.bf16.msra.mxu0 0
        %1326 = vmatprep.subr.bf16.mxu0 0
        %1327 = vmatpush2.bf16.msra.mxu0 0
        %1328 = vmatprep.mubr.bf16.mxu0 0
        %1329 = vmatmul.mubr.bf16.gmra.mxu0 %v1294
        %v1330 = vpop.f32.mrf.mxu0
        %v1331 = vadd.f32 %v1279, %v1330
        %v1332 = vpop.f32.mrf.mxu0
        %v1333 = vpop.f32.mrf.mxu0
        %v1334 = vpop.f32.mrf.mxu0
        %1335 = vdwg.mxu0
        %v1336 = vld [vmem:[%s956] sm:$0xf]
        %v1337 = vld [vmem:[%s956 + $0x4] sm:$0xf]
        %v1338 = vld [vmem:[%s956 + $0x8] sm:$0xf]
        %v1339 = vld [vmem:[%s956 + $0xc] sm:$0xf]
        %v1340 = vpack.c.bf16 %v990, %v989
        %v1341 = vpack.c.bf16 %v991, %v991
        %v1342 = vld [vmem:[%s797] sm:$0x1]
        %v1344 = vlaneseq
        %v1345 = vshrl.u32 %v1344, 7
        %v1346 = vsub.s32 0, %v1345
        %v1347 = vrot.slane %v1342, %v1346
        %v1353 = vunpack.c.l.b16 %v1336
        %v1354 = vunpack.c.l.b16 %v1337
        %v1355 = vunpack.c.l.b16 %v1338
        %v1356 = vunpack.c.l.b16 %v1339
        %v1357 = vpack.c.b16 %v1354, %v1353
        %v1358 = vpack.c.b16 %v1356, %v1355
        %v1362 = vsel %vm1016, %v1340, 0
        %v1365 = vsel %vm1016, %v1341, 0
        %1367 = vmatprep.subr.bf16.mxu0 0
        %1368 = vmatpush1.bf16.msra.mxu0 0
        %1369 = vmatprep.subr.bf16.mxu0 0
        %1370 = vmatpush1.bf16.msra.mxu0 0
        %1371 = vmatprep.subr.bf16.mxu0 0
        %1372 = vmatpush1.bf16.msra.mxu0 0
        %1373 = vmatprep.subr.bf16.mxu0 0
        %1374 = vmatpush1.bf16.msra.mxu0 0
        %1375 = vmatprep.subr.bf16.mxu0 0
        %1376 = vmatpush1.bf16.msra.mxu0 0
        %1377 = vmatprep.subr.bf16.mxu0 0
        %1378 = vmatpush1.bf16.msra.mxu0 0
        %1379 = vmatprep.subr.bf16.mxu0 0
        %1380 = vmatpush1.bf16.msra.mxu0 %v1358
        %1381 = vmatprep.subr.bf16.mxu0 0
        %1382 = vmatpush1.bf16.msra.mxu0 %v1357
        %1383 = vmatprep.subr.bf16.mxu0 0
        %1384 = vmatpush2.bf16.msra.mxu0 0
        %1385 = vmatprep.subr.bf16.mxu0 0
        %1386 = vmatpush2.bf16.msra.mxu0 0
        %1387 = vmatprep.subr.bf16.mxu0 0
        %1388 = vmatpush2.bf16.msra.mxu0 0
        %1389 = vmatprep.subr.bf16.mxu0 0
        %1390 = vmatpush2.bf16.msra.mxu0 0
        %1391 = vmatprep.subr.bf16.mxu0 0
        %1392 = vmatpush2.bf16.msra.mxu0 0
        %1393 = vmatprep.subr.bf16.mxu0 0
        %1394 = vmatpush2.bf16.msra.mxu0 0
        %1395 = vmatprep.subr.bf16.mxu0 0
        %1396 = vmatpush2.bf16.msra.mxu0 0
        %1397 = vmatprep.subr.bf16.mxu0 0
        %1398 = vmatpush2.bf16.msra.mxu0 0
        %1399 = vmatprep.mubr.bf16.mxu0 0
        %1400 = vmatmul.mubr.bf16.gmra.mxu0 %v1362
        %v1401 = vpop.f32.mrf.mxu0
        %v1402 = vadd.f32 %v1347, %v1401
        %v1403 = vpop.f32.mrf.mxu0
        %v1404 = vpop.f32.mrf.mxu0
        %v1405 = vadd.f32 %v1347, %v1404
        %v1406 = vpop.f32.mrf.mxu0
        %1407 = vmatprep.mubr.bf16.mxu0 0
        %1408 = vmatmul.mubr.bf16.gmra.mxu0 %v1365
        %v1409 = vpop.f32.mrf.mxu0
        %v1410 = vadd.f32 %v1347, %v1409
        %v1411 = vpop.f32.mrf.mxu0
        %v1412 = vpop.f32.mrf.mxu0
        %v1413 = vpop.f32.mrf.mxu0
        %1414 = vdwg.mxu0
        %v1415 = vpack.c.bf16 %v1331, %v1331
        %v1416 = vpack.c.bf16 %v1405, %v1402
        %v1417 = vpack.c.bf16 %v1410, %v1410
        %v1419 = vsel %vm1016, %v1415, 0
        %v1422 = vsel %vm1016, %v1416, 0
        %v1425 = vsel %vm1016, %v1417, 0
        %1427 = vmatprep.subr.bf16.mxu0 0
        %1428 = vmatpush1.bf16.xpose.msra.mxu0 0
        %1429 = vmatprep.subr.bf16.mxu0 0
        %1430 = vmatpush1.bf16.xpose.msra.mxu0 0
        %1431 = vmatprep.subr.bf16.mxu0 0
        %1432 = vmatpush1.bf16.xpose.msra.mxu0 0
        %1433 = vmatprep.subr.bf16.mxu0 0
        %1434 = vmatpush1.bf16.xpose.msra.mxu0 0
        %1435 = vmatprep.subr.bf16.mxu0 0
        %1436 = vmatpush1.bf16.xpose.msra.mxu0 0
        %1437 = vmatprep.subr.bf16.mxu0 0
        %1438 = vmatpush1.bf16.xpose.msra.mxu0 0
        %1439 = vmatprep.subr.bf16.mxu0 0
        %1440 = vmatpush1.bf16.xpose.msra.mxu0 %v1425
        %1441 = vmatprep.subr.bf16.mxu0 0
        %1442 = vmatpush1.bf16.xpose.msra.mxu0 %v1422
        %1443 = vmatprep.subr.bf16.mxu0 0
        %1444 = vmatpush2.bf16.xpose.msra.mxu0 0
        %1445 = vmatprep.subr.bf16.mxu0 0
        %1446 = vmatpush2.bf16.xpose.msra.mxu0 0
        %1447 = vmatprep.subr.bf16.mxu0 0
        %1448 = vmatpush2.bf16.xpose.msra.mxu0 0
        %1449 = vmatprep.subr.bf16.mxu0 0
        %1450 = vmatpush2.bf16.xpose.msra.mxu0 0
        %1451 = vmatprep.subr.bf16.mxu0 0
        %1452 = vmatpush2.bf16.xpose.msra.mxu0 0
        %1453 = vmatprep.subr.bf16.mxu0 0
        %1454 = vmatpush2.bf16.xpose.msra.mxu0 0
        %1455 = vmatprep.subr.bf16.mxu0 0
        %1456 = vmatpush2.bf16.xpose.msra.mxu0 0
        %1457 = vmatprep.subr.bf16.mxu0 0
        %1458 = vmatpush2.bf16.xpose.msra.mxu0 0
        %1459 = vmatprep.mubr.bf16.mxu0 0
        %1460 = vmatmul.mubr.bf16.gmra.mxu0 %v1419
        %v1461 = vpop.f32.mrf.mxu0
        %v1462 = vadd.f32 0.0, %v1461
        %v1463 = vpop.f32.mrf.mxu0
        %v1464 = vpop.f32.mrf.mxu0
        %v1465 = vpop.f32.mrf.mxu0
        %1466 = vdwg.mxu0
        %v1467 = vmul.f32 %v1462, 0.17677669
        %v1468 = vld [vmem:[%s3] sm:$0x1]
        %v1470 = vlaneseq
        %v1471 = vshrl.u32 %v1470, 7
        %v1472 = vsub.s32 0, %v1471
        %v1473 = vrot.slane %v1468, %v1472
        %v1475 = vadd.f32 %v1467, %v1473
        %vm1476 = vcmask 195584
        %v1477 = vsel %vm1476, %v1475, -inf
        %1478 = vmax.xlane.f32.xlu0 %v1477
        %v1479 = vpop.xlane.xlu0 %1478
        %v1480 = vsub.f32 %v1475, %v1479
        %v1481 = vmul.f32 %v1480, 1.442695
        %v1482 = vpow.pop %v1481
        %v1483 = vsel %vm1476, %v1482, 0.0
        %1484 = vadd.xlane.f32.xlu0 %v1483
        %v1485 = vpop.xlane.xlu0 %1484
        %v1486 = vrcp.pop %v1485
        %v1487 = vmul.f32 %v1482, %v1486
        %v1488 = vpack.c.bf16 %v1487, %v1487
        %1491 = vrot.lane.b32.xlu0 %v1416, 96
        %v1492 = vpop.permute.xlu0 %1491
        %1493 = vrot.lane.b32.xlu0 %v1417, 96
        %v1494 = vpop.permute.xlu0 %1493
        %v1497 = vsel %vm1476, %v1488, 0
        %v1500 = vsel %vm1131, %v1494, 0
        %1502 = vmatprep.subr.bf16.mxu0 0
        %1503 = vmatpush1.bf16.msra.mxu0 0
        %1504 = vmatprep.subr.bf16.mxu0 0
        %1505 = vmatpush1.bf16.msra.mxu0 0
        %1506 = vmatprep.subr.bf16.mxu0 0
        %1507 = vmatpush1.bf16.msra.mxu0 0
        %1508 = vmatprep.subr.bf16.mxu0 0
        %1509 = vmatpush1.bf16.msra.mxu0 0
        %1510 = vmatprep.subr.bf16.mxu0 0
        %1511 = vmatpush1.bf16.msra.mxu0 0
        %1512 = vmatprep.subr.bf16.mxu0 0
        %1513 = vmatpush1.bf16.msra.mxu0 0
        %1514 = vmatprep.subr.bf16.mxu0 0
        %1515 = vmatpush1.bf16.msra.mxu0 %v1500
        %1516 = vmatprep.subr.bf16.mxu0 0
        %1517 = vmatpush1.bf16.msra.mxu0 %v1492
        %1518 = vmatprep.subr.bf16.mxu0 0
        %1519 = vmatpush2.bf16.msra.mxu0 0
        %1520 = vmatprep.subr.bf16.mxu0 0
        %1521 = vmatpush2.bf16.msra.mxu0 0
        %1522 = vmatprep.subr.bf16.mxu0 0
        %1523 = vmatpush2.bf16.msra.mxu0 0
        %1524 = vmatprep.subr.bf16.mxu0 0
        %1525 = vmatpush2.bf16.msra.mxu0 0
        %1526 = vmatprep.subr.bf16.mxu0 0
        %1527 = vmatpush2.bf16.msra.mxu0 0
        %1528 = vmatprep.subr.bf16.mxu0 0
        %1529 = vmatpush2.bf16.msra.mxu0 0
        %1530 = vmatprep.subr.bf16.mxu0 0
        %1531 = vmatpush2.bf16.msra.mxu0 0
        %1532 = vmatprep.subr.bf16.mxu0 0
        %1533 = vmatpush2.bf16.msra.mxu0 0
        %1534 = vmatprep.mubr.bf16.mxu0 0
        %1535 = vmatmul.mubr.bf16.gmra.mxu0 %v1497
        %v1536 = vpop.f32.mrf.mxu0
        %v1537 = vadd.f32 0.0, %v1536
        %v1538 = vpop.f32.mrf.mxu0
        %v1539 = vpop.f32.mrf.mxu0
        %v1540 = vpop.f32.mrf.mxu0
        %1541 = vdwg.mxu0
        %v1542 = vld [vmem:[%s961] sm:$0xf]
        %v1543 = vld [vmem:[%s961 + $0x4] sm:$0xf]
        %v1544 = vld [vmem:[%s961 + $0x8] sm:$0xf]
        %v1545 = vld [vmem:[%s961 + $0xc] sm:$0xf]
        %v1546 = vpack.c.bf16 %v1537, %v1537
        %v1547 = vld [vmem:[%s805] sm:$0x1]
        %v1549 = vlaneseq
        %v1550 = vshrl.u32 %v1549, 7
        %v1551 = vsub.s32 0, %v1550
        %v1552 = vrot.slane %v1547, %v1551
        %v1558 = vunpack.c.l.b16 %v1542
        %v1559 = vunpack.c.l.b16 %v1543
        %v1560 = vunpack.c.l.b16 %v1544
        %v1561 = vunpack.c.l.b16 %v1545
        %v1562 = vpack.c.b16 %v1559, %v1558
        %v1563 = vpack.c.b16 %v1561, %v1560
        %v1567 = vsel %vm1016, %v1546, 0
        %1569 = vmatprep.subr.bf16.mxu0 0
        %1570 = vmatpush1.bf16.msra.mxu0 0
        %1571 = vmatprep.subr.bf16.mxu0 0
        %1572 = vmatpush1.bf16.msra.mxu0 0
        %1573 = vmatprep.subr.bf16.mxu0 0
        %1574 = vmatpush1.bf16.msra.mxu0 0
        %1575 = vmatprep.subr.bf16.mxu0 0
        %1576 = vmatpush1.bf16.msra.mxu0 0
        %1577 = vmatprep.subr.bf16.mxu0 0
        %1578 = vmatpush1.bf16.msra.mxu0 0
        %1579 = vmatprep.subr.bf16.mxu0 0
        %1580 = vmatpush1.bf16.msra.mxu0 0
        %1581 = vmatprep.subr.bf16.mxu0 0
        %1582 = vmatpush1.bf16.msra.mxu0 %v1563
        %1583 = vmatprep.subr.bf16.mxu0 0
        %1584 = vmatpush1.bf16.msra.mxu0 %v1562
        %1585 = vmatprep.subr.bf16.mxu0 0
        %1586 = vmatpush2.bf16.msra.mxu0 0
        %1587 = vmatprep.subr.bf16.mxu0 0
        %1588 = vmatpush2.bf16.msra.mxu0 0
        %1589 = vmatprep.subr.bf16.mxu0 0
        %1590 = vmatpush2.bf16.msra.mxu0 0
        %1591 = vmatprep.subr.bf16.mxu0 0
        %1592 = vmatpush2.bf16.msra.mxu0 0
        %1593 = vmatprep.subr.bf16.mxu0 0
        %1594 = vmatpush2.bf16.msra.mxu0 0
        %1595 = vmatprep.subr.bf16.mxu0 0
        %1596 = vmatpush2.bf16.msra.mxu0 0
        %1597 = vmatprep.subr.bf16.mxu0 0
        %1598 = vmatpush2.bf16.msra.mxu0 0
        %1599 = vmatprep.subr.bf16.mxu0 0
        %1600 = vmatpush2.bf16.msra.mxu0 0
        %1601 = vmatprep.mubr.bf16.mxu0 0
        %1602 = vmatmul.mubr.bf16.gmra.mxu0 %v1567
        %v1603 = vpop.f32.mrf.mxu0
        %v1604 = vadd.f32 %v1552, %v1603
        %v1605 = vpop.f32.mrf.mxu0
        %v1606 = vpop.f32.mrf.mxu0
        %v1607 = vpop.f32.mrf.mxu0
        %1608 = vdwg.mxu0
        %v1609 = vadd.f32 %v1268, %v1604
        %v1610 = vld [vmem:[%s965 + $0x2] sm:$0x1]
        %v1611 = vld [vmem:[%s965 + $0x3] sm:$0x1]
        %v1612 = vsel %vm1016, %v1609, 0.0
        %1613 = vadd.xlane.f32.xlu0 %v1612
        %v1614 = vpop.xlane.xlu0 %1613
        %v1615 = vmul.f32 %v1614, %v1248
        %v1616 = vsub.f32 %v1609, %v1615
        %v1617 = vmul.f32 %v1616, %v1616
        %v1618 = vsel %vm1016, %v1617, 0.0
        %1619 = vadd.xlane.f32.xlu0 %v1618
        %v1620 = vpop.xlane.xlu0 %1619
        %v1621 = vmul.f32 %v1620, %v1248
        %v1622 = vadd.f32 %v1621, 1e-05
        %v1623 = vrsqrt.pop %v1622
        %v1624 = vmul.f32 %v1616, %v1623
        %v1625 = vlaneseq
        %v1626 = vshrl.u32 %v1625, 7
        %v1627 = vsub.s32 0, %v1626
        %v1628 = vrot.slane %v1610, %v1627
        %v1629 = vmul.f32 %v1624, %v1628
        %v1630 = vlaneseq
        %v1631 = vshrl.u32 %v1630, 7
        %v1632 = vsub.s32 0, %v1631
        %v1633 = vrot.slane %v1611, %v1632
        %v1634 = vadd.f32 %v1629, %v1633
        %v1635 = vld [vmem:[%s970] sm:$0xf]
        %v1636 = vld [vmem:[%s970 + $0x4] sm:$0xf]
        %v1637 = vld [vmem:[%s970 + $0x8] sm:$0xf]
        %v1638 = vld [vmem:[%s970 + $0xc] sm:$0xf]
        %v1639 = vpack.c.bf16 %v1634, %v1634
        %v1640 = vld [vmem:[%s813] sm:$0x1]
        %v1642 = vlaneseq
        %v1643 = vshrl.u32 %v1642, 7
        %v1644 = vsub.s32 0, %v1643
        %v1645 = vrot.slane %v1640, %v1644
        %v1651 = vunpack.c.l.b16 %v1635
        %v1652 = vunpack.c.l.b16 %v1636
        %v1653 = vunpack.c.l.b16 %v1637
        %v1654 = vunpack.c.l.b16 %v1638
        %v1655 = vpack.c.b16 %v1652, %v1651
        %v1656 = vpack.c.b16 %v1654, %v1653
        %v1660 = vsel %vm1016, %v1639, 0
        %1662 = vmatprep.subr.bf16.mxu0 0
        %1663 = vmatpush1.bf16.msra.mxu0 0
        %1664 = vmatprep.subr.bf16.mxu0 0
        %1665 = vmatpush1.bf16.msra.mxu0 0
        %1666 = vmatprep.subr.bf16.mxu0 0
        %1667 = vmatpush1.bf16.msra.mxu0 0
        %1668 = vmatprep.subr.bf16.mxu0 0
        %1669 = vmatpush1.bf16.msra.mxu0 0
        %1670 = vmatprep.subr.bf16.mxu0 0
        %1671 = vmatpush1.bf16.msra.mxu0 0
        %1672 = vmatprep.subr.bf16.mxu0 0
        %1673 = vmatpush1.bf16.msra.mxu0 0
        %1674 = vmatprep.subr.bf16.mxu0 0
        %1675 = vmatpush1.bf16.msra.mxu0 %v1656
        %1676 = vmatprep.subr.bf16.mxu0 0
        %1677 = vmatpush1.bf16.msra.mxu0 %v1655
        %1678 = vmatprep.subr.bf16.mxu0 0
        %1679 = vmatpush2.bf16.msra.mxu0 0
        %1680 = vmatprep.subr.bf16.mxu0 0
        %1681 = vmatpush2.bf16.msra.mxu0 0
        %1682 = vmatprep.subr.bf16.mxu0 0
        %1683 = vmatpush2.bf16.msra.mxu0 0
        %1684 = vmatprep.subr.bf16.mxu0 0
        %1685 = vmatpush2.bf16.msra.mxu0 0
        %1686 = vmatprep.subr.bf16.mxu0 0
        %1687 = vmatpush2.bf16.msra.mxu0 0
        %1688 = vmatprep.subr.bf16.mxu0 0
        %1689 = vmatpush2.bf16.msra.mxu0 0
        %1690 = vmatprep.subr.bf16.mxu0 0
        %1691 = vmatpush2.bf16.msra.mxu0 0
        %1692 = vmatprep.subr.bf16.mxu0 0
        %1693 = vmatpush2.bf16.msra.mxu0 0
        %1694 = vmatprep.mubr.bf16.mxu0 0
        %1695 = vmatmul.mubr.bf16.gmra.mxu0 %v1660
        %v1696 = vpop.f32.mrf.mxu0
        %v1697 = vadd.f32 %v1645, %v1696
        %v1698 = vpop.f32.mrf.mxu0
        %v1699 = vpop.f32.mrf.mxu0
        %v1700 = vpop.f32.mrf.mxu0
        %1701 = vdwg.mxu0
        %v1702 = vmax.f32 %v1697, 0.0
        %v1703 = vld [vmem:[%s975] sm:$0xf]
        %v1704 = vld [vmem:[%s975 + $0x4] sm:$0xf]
        %v1705 = vld [vmem:[%s975 + $0x8] sm:$0xf]
        %v1706 = vld [vmem:[%s975 + $0xc] sm:$0xf]
        %v1707 = vld [vmem:[%s975 + $0x10] sm:$0xf]
        %v1708 = vld [vmem:[%s975 + $0x14] sm:$0xf]
        %v1709 = vld [vmem:[%s975 + $0x18] sm:$0xf]
        %v1710 = vld [vmem:[%s975 + $0x1c] sm:$0xf]
        %v1711 = vpack.c.bf16 %v1702, %v1702
        %v1712 = vld [vmem:[%s821] sm:$0x1]
        %v1714 = vlaneseq
        %v1715 = vshrl.u32 %v1714, 7
        %v1716 = vsub.s32 0, %v1715
        %v1717 = vrot.slane %v1712, %v1716
        %v1727 = vunpack.c.l.b16 %v1703
        %v1728 = vunpack.c.l.b16 %v1704
        %v1729 = vunpack.c.l.b16 %v1705
        %v1730 = vunpack.c.l.b16 %v1706
        %v1731 = vunpack.c.l.b16 %v1707
        %v1732 = vunpack.c.l.b16 %v1708
        %v1733 = vunpack.c.l.b16 %v1709
        %v1734 = vunpack.c.l.b16 %v1710
        %v1735 = vpack.c.b16 %v1728, %v1727
        %v1736 = vpack.c.b16 %v1730, %v1729
        %v1737 = vpack.c.b16 %v1732, %v1731
        %v1738 = vpack.c.b16 %v1734, %v1733
        %vm1743 = vcmask 523264
        %v1745 = vsel %vm1743, %v1711, 0
        %1747 = vmatprep.subr.bf16.mxu0 0
        %1748 = vmatpush1.bf16.msra.mxu0 0
        %1749 = vmatprep.subr.bf16.mxu0 0
        %1750 = vmatpush1.bf16.msra.mxu0 0
        %1751 = vmatprep.subr.bf16.mxu0 0
        %1752 = vmatpush1.bf16.msra.mxu0 0
        %1753 = vmatprep.subr.bf16.mxu0 0
        %1754 = vmatpush1.bf16.msra.mxu0 0
        %1755 = vmatprep.subr.bf16.mxu0 0
        %1756 = vmatpush1.bf16.msra.mxu0 %v1738
        %1757 = vmatprep.subr.bf16.mxu0 0
        %1758 = vmatpush1.bf16.msra.mxu0 %v1737
        %1759 = vmatprep.subr.bf16.mxu0 0
        %1760 = vmatpush1.bf16.msra.mxu0 %v1736
        %1761 = vmatprep.subr.bf16.mxu0 0
        %1762 = vmatpush1.bf16.msra.mxu0 %v1735
        %1763 = vmatprep.subr.bf16.mxu0 0
        %1764 = vmatpush2.bf16.msra.mxu0 0
        %1765 = vmatprep.subr.bf16.mxu0 0
        %1766 = vmatpush2.bf16.msra.mxu0 0
        %1767 = vmatprep.subr.bf16.mxu0 0
        %1768 = vmatpush2.bf16.msra.mxu0 0
        %1769 = vmatprep.subr.bf16.mxu0 0
        %1770 = vmatpush2.bf16.msra.mxu0 0
        %1771 = vmatprep.subr.bf16.mxu0 0
        %1772 = vmatpush2.bf16.msra.mxu0 0
        %1773 = vmatprep.subr.bf16.mxu0 0
        %1774 = vmatpush2.bf16.msra.mxu0 0
        %1775 = vmatprep.subr.bf16.mxu0 0
        %1776 = vmatpush2.bf16.msra.mxu0 0
        %1777 = vmatprep.subr.bf16.mxu0 0
        %1778 = vmatpush2.bf16.msra.mxu0 0
        %1779 = vmatprep.mubr.bf16.mxu0 0
        %1780 = vmatmul.mubr.bf16.gmra.mxu0 %v1745
        %v1781 = vpop.f32.mrf.mxu0
        %v1782 = vadd.f32 %v1717, %v1781
        %v1783 = vpop.f32.mrf.mxu0
        %v1784 = vpop.f32.mrf.mxu0
        %v1785 = vpop.f32.mrf.mxu0
        %1786 = vdwg.mxu0
        %v1787 = vadd.f32 %v1634, %v1782
        %v1788 = vld [vmem:[%s965 + $0x4] sm:$0x1]
        %v1789 = vld [vmem:[%s965 + $0x5] sm:$0x1]
        %v1790 = vsel %vm1016, %v1787, 0.0
        %1791 = vadd.xlane.f32.xlu0 %v1790
        %v1792 = vpop.xlane.xlu0 %1791
        %v1793 = vmul.f32 %v1792, %v1248
        %v1794 = vsub.f32 %v1787, %v1793
        %v1795 = vmul.f32 %v1794, %v1794
        %v1796 = vsel %vm1016, %v1795, 0.0
        %1797 = vadd.xlane.f32.xlu0 %v1796
        %v1798 = vpop.xlane.xlu0 %1797
        %v1799 = vmul.f32 %v1798, %v1248
        %v1800 = vadd.f32 %v1799, 1e-05
        %v1801 = vrsqrt.pop %v1800
        %v1802 = vmul.f32 %v1794, %v1801
        %v1803 = vlaneseq
        %v1804 = vshrl.u32 %v1803, 7
        %v1805 = vsub.s32 0, %v1804
        %v1806 = vrot.slane %v1788, %v1805
        %v1807 = vmul.f32 %v1802, %v1806
        %v1808 = vlaneseq
        %v1809 = vshrl.u32 %v1808, 7
        %v1810 = vsub.s32 0, %v1809
        %v1811 = vrot.slane %v1789, %v1810
        %v1812 = vadd.f32 %v1807, %v1811
        %1813 = vst.msk [vmem:[#allocation2] sm:$0xff] %vm1016, %v1812
        %1814 = vst.msk [vmem:[%s979] sm:$0xff] %vm1016, %v1812
        %p1815 = scmp.lt.s32.totalorder %s43, 1
        %s1816 = scalar_select %p1815, %s43, 1
        %s1817 = smul.addr %s1816, 8
        %s1818 = scalar_lea.vmem %s19, %s1817
        // Predicated region
        $region133: #{general_decoder_forward.1} parent=95 // pred_check
          %p1819 = pneg %p535
        $region134: #{general_decoder_forward.1} parent=95 // pred_check_branch
          %1821 = sbr.rel (%p1819) target = $region136
        $region135: #{general_decoder_forward.1} parent=95 // pred_region
          _
        $region136: #{general_decoder_forward.1} parent=95 // pred_fallthru
          _
      $region96: #{general_decoder_forward.1} parent=5 // pred_fallthru
        _
      %p1822 = scmp.le.s32.totalorder 2, %s38
      // Predicated region
      $region137: #{general_decoder_forward.1} parent=5 // pred_check
        %p1823 = pneg %p1822
      $region138: #{general_decoder_forward.1} parent=5 // pred_check_branch
        %1825 = sbr.rel (%p1823) target = $region140
      $region139: #{general_decoder_forward.1} parent=5 // pred_region
        %s1826 = ssub.s32 %s38, 2
        // Predicated region
        $region141: #{general_decoder_forward.1} parent=139 // pred_check
          %p1827 = pneg %p541
        $region142: #{general_decoder_forward.1} parent=139 // pred_check_branch
          %1829 = sbr.rel (%p1827) target = $region144
        $region143: #{general_decoder_forward.1} parent=139 // pred_region
          %p1830 = scmp.lt.s32.totalorder %s44, 1
          %s1831 = scalar_select %p1830, %s44, 1
          %s1832 = smul.addr %s1831, 8
          %s1833 = scalar_lea.vmem %s19, %s1832
        $region144: #{general_decoder_forward.1} parent=139 // pred_fallthru
          _
      $region140: #{general_decoder_forward.1} parent=5 // pred_fallthru
        _
    $region6: #{general_decoder_forward.1} parent=1 // loop_footer
      %s42 = sadd.s32 1, %s38
    $region7: #{general_decoder_forward.1} parent=1 // loop_footer_branch
      %37 = sbr.rel target = $region3
    $region8: #{general_decoder_forward.1} parent=1 // loop_exit
      _
    %1834 = vsyncpa [#allocation4], 1
    %s1835 = scalar_lea.sflag [#allocation4], 1
    %1836 = vsyncpa %s1835, 1
    %1837 = vsyncpa [#allocation6], 1
    %s1838 = scalar_lea.sflag [#allocation6], 1
    %1839 = vsyncpa %s1838, 1
    %1840 = vsyncpa [#allocation9], 1
    %s1841 = scalar_lea.sflag [#allocation9], 1
    %1842 = vsyncpa %s1841, 1
    %1843 = vsyncpa [#allocation12], 1
    %s1844 = scalar_lea.sflag [#allocation12], 1
    %1845 = vsyncpa %s1844, 1
    %1846 = vsyncpa [#allocation15], 1
    %s1847 = scalar_lea.sflag [#allocation15], 1
    %1848 = vsyncpa %s1847, 1

</llo_original>
